<compile_context>
chip_gen: v7x
topology: tpu7x:2x2x1
jax: 0.10.0
libtpu: 0.0.40
codegen_flags: <defaults>
</compile_context>

<pallas_src>
import functools

import jax
import jax.numpy as jnp
import numpy as np
from jax.experimental import pallas as pl
from jax.experimental.pallas import tpu as pltpu


def _mha_kernel(xq_ref, xk_ref, xv_ref,
                wqkv_ref, bqkv_ref, wo_ref, bo_ref,
                reps_ref, attn_ref,
                *, block_b: int, seq_len: int, nr_heads: int, dim_head: int,
                causal_mask: bool, compute_dtype):
    """One grid step == `block_b` batch elements."""
    bt, S, H, dh = block_b, seq_len, nr_heads, dim_head
    Dh = H * dh
    btS = bt * S

    # --- fused full-width projections: one 2-D MXU matmul per q/k/v ----------
    def project(x_ref, idx):
        x = x_ref[...].astype(compute_dtype)                    # (btS, Din)
        y = jnp.dot(x, wqkv_ref[idx],                           # (Din, Dh) bf16
                    preferred_element_type=jnp.float32)
        return y + bqkv_ref[idx]                                 # (btS, Dh) f32

    q2 = project(xq_ref, 0)        # 1/sqrt(dh) already folded into Wq / bq
    k2 = project(xk_ref, 1)
    v2 = project(xv_ref, 2)

    # Free reshapes: split the leading (batch*seq) rows back into (bt, S, .)
    # (S == 8 == the f32 sublane tile, so no relayout is required).
    q3 = q2.reshape(bt, S, Dh)
    k3 = k2.reshape(bt, S, Dh)
    v3 = v2.reshape(bt, S, Dh)

    if causal_mask:
        row = jax.lax.broadcasted_iota(jnp.int32, (S, S), 0)
        col = jax.lax.broadcasted_iota(jnp.int32, (S, S), 1)
        keep = (col <= row)[None, :, :]                          # built once

    wo = wo_ref[...]                                             # (Dh, Dh) bf16
    reps_acc = jnp.zeros((btS, Dh), jnp.float32)

    # Per-head attention (contraction is intrinsically dh-wide); static unroll.
    for h in range(H):
        sl = slice(h * dh, (h + 1) * dh)
        qh = q3[:, :, sl].astype(compute_dtype)                  # (bt, S, dh)
        kh = k3[:, :, sl].astype(compute_dtype)
        vh = v3[:, :, sl].astype(compute_dtype)

        s = jnp.einsum('bqd,bkd->bqk', qh, kh,
                       preferred_element_type=jnp.float32)       # (bt, S, S)
        if causal_mask:
            s = jnp.where(keep, s, jnp.float32(-1e9))

        # exact f32 softmax (rows of the stored attention sum to 1)
        s_max = jnp.max(s, axis=-1, keepdims=True)
        e = jnp.exp(s - s_max)
        p = e / jnp.sum(e, axis=-1, keepdims=True)

        # lane-dense attention store: columns [h*S, (h+1)*S) of (btS, H*S)
        attn_ref[:, h * S:(h + 1) * S] = p.reshape(btS, S).astype(attn_ref.dtype)

        # context vectors + output projection contribution of this head:
        # reps += o_h @ Wo[h*dh:(h+1)*dh, :]   (no Wo replication across bt)
        o = jnp.einsum('bqk,bkd->bqd', p.astype(compute_dtype), vh,
                       preferred_element_type=jnp.float32)       # (bt, S, dh)
        reps_acc = reps_acc + jnp.dot(o.reshape(btS, dh).astype(compute_dtype),
                                      wo[h * dh:(h + 1) * dh, :],
                                      preferred_element_type=jnp.float32)

    reps_ref[...] = (reps_acc + bo_ref[...]).astype(reps_ref.dtype)


# ----------------------------- host-side sizing ------------------------------

def _round_up(x, m):
    return -(-x // m) * m


def _padded_bytes(shape, itemsize):
    """VMEM footprint of an array with (sublane, lane) tile padding."""
    shape = tuple(int(d) for d in shape)
    if len(shape) < 2:
        shape = (1,) * (2 - len(shape)) + shape
    lead = 1
    for d in shape[:-2]:
        lead *= d
    sub_tile = 8 if itemsize >= 4 else 32 // itemsize
    return lead * _round_up(shape[-2], sub_tile) * _round_up(shape[-1], 128) * itemsize


def _vmem_estimate(block_b, S, Din, Dh, H):
    """Per-step VMEM bytes: double-buffered I/O + weights + f32 intermediates."""
    btS = block_b * S
    est = 0
    # double-buffered input / output blocks (f32)
    est += 2 * 3 * _padded_bytes((btS, Din), 4)
    est += 2 * (_padded_bytes((btS, Dh), 4) + _padded_bytes((btS, H * S), 4))
    # weight / bias blocks (double-buffered by the pipeline)
    est += 2 * (_padded_bytes((3, Din, Dh), 2) + _padded_bytes((Dh, Dh), 2)
                + _padded_bytes((3, 1, Dh), 4) + _padded_bytes((1, Dh), 4))
    # f32 q/k/v intermediates, bf16 operand copies, reps accumulator
    est += 3 * (_padded_bytes((btS, Dh), 4) + _padded_bytes((btS, Dh), 2)
                + _padded_bytes((btS, Din), 2))
    est += _padded_bytes((btS, Dh), 4)
    # per-head score / exp / prob values (assume a few heads' worth live at once)
    est += 4 * 3 * _padded_bytes((block_b * S, S), 4)
    return est


def _pick_block_b(B, S, Din, Dh, H, vmem_budget, min_grid_steps):
    """Largest useful divisor of B under the VMEM budget and grid constraints."""
    valid = [b for b in range(1, B + 1)
             if B % b == 0 and _vmem_estimate(b, S, Din, Dh, H) <= vmem_budget]
    if not valid:
        valid = [1]
    # keep >= min_grid_steps grid steps so both v7x TensorCores get work
    pref = [b for b in valid if B // b >= min_grid_steps]
    if pref:
        valid = pref
    # grow block_b until the matmul M dim (bt*S) reaches the MXU row target
    target_rows = 256
    hit = [b for b in valid if b * S >= target_rows]
    return min(hit) if hit else max(valid)


# --------------------------------- wrapper -----------------------------------

def multi_head_attention(q_in, k_in, v_in, params, *, nr_heads,
                         mask=False, block_b=None, matmul_dtype=jnp.bfloat16):
    """q_in/k_in/v_in: (B, S, dim_input).

    params: dict with wq,wk,wv,wo stored as (in_features, out_features) f32
    (nn.Linear weight pre-transposed) and bq,bk,bv,bo as (out_features,) f32.
    Returns (reps (B,S,dim_hidden), attentions (B,H,S,S)), both f32.
    """
    B, S, Din = q_in.shape
    Dh = params["wq"].shape[1]
    H = nr_heads
    assert Dh % H == 0
    dh = Dh // H
    scale = 1.0 / float(dh) ** 0.5

    # generation-aware VMEM budget (64 MiB on v7x, 128 MiB on v5e/v6e)
    try:
        vmem_cap = int(pltpu.get_tpu_info().vmem_capacity_bytes)
    except Exception:
        vmem_cap = 128 * 1024 * 1024

    if block_b is None:
        block_b = _pick_block_b(B, S, Din, Dh, H,
                                vmem_budget=vmem_cap // 2,
                                min_grid_steps=2 if B >= 2 else 1)
    assert B % block_b == 0
    btS = block_b * S

    vmem_limit = int(min(vmem_cap * 3 // 4,
                         max(32 * 1024 * 1024,
                             2 * _vmem_estimate(block_b, S, Din, Dh, H))))

    # Host-side (free) weight prep: fused 2-D weights, scale folded into Wq/bq.
    wq = (params["wq"] * scale).astype(matmul_dtype)
    wk = params["wk"].astype(matmul_dtype)
    wv = params["wv"].astype(matmul_dtype)
    wqkv = jnp.stack([wq, wk, wv])                                   # (3, Din, Dh)
    bqkv = jnp.stack([params["bq"] * scale, params["bk"], params["bv"]]
                     ).astype(jnp.float32).reshape(3, 1, Dh)
    wo = params["wo"].astype(matmul_dtype)                           # (Dh, Dh)
    bo = params["bo"].astype(jnp.float32).reshape(1, Dh)

    # Lane-friendly 2-D input views (free XLA reshapes).
    xq2 = q_in.reshape(B * S, Din)
    xk2 = k_in.reshape(B * S, Din)
    xv2 = v_in.reshape(B * S, Din)

    kernel = functools.partial(_mha_kernel, block_b=block_b, seq_len=S,
                               nr_heads=H, dim_head=dh, causal_mask=mask,
                               compute_dtype=matmul_dtype)

    def x_spec():
        return pl.BlockSpec((btS, Din), lambda i: (i, 0))

    grid_spec = pltpu.PrefetchScalarGridSpec(
        num_scalar_prefetch=0,
        grid=(B // block_b,),
        in_specs=[
            x_spec(), x_spec(), x_spec(),                            # q_in, k_in, v_in
            pl.BlockSpec((3, Din, Dh), lambda i: (0, 0, 0)),         # Wqkv
            pl.BlockSpec((3, 1, Dh), lambda i: (0, 0, 0)),           # bqkv
            pl.BlockSpec((Dh, Dh), lambda i: (0, 0)),                # Wo
            pl.BlockSpec((1, Dh), lambda i: (0, 0)),                 # bo
        ],
        out_specs=[
            pl.BlockSpec((btS, Dh), lambda i: (i, 0)),               # reps (packed)
            pl.BlockSpec((btS, H * S), lambda i: (i, 0)),            # attn (packed)
        ],
    )

    reps2d, attn2d = pl.pallas_call(
        kernel,
        out_shape=(jax.ShapeDtypeStruct((B * S, Dh), jnp.float32),
                   jax.ShapeDtypeStruct((B * S, H * S), jnp.float32)),
        grid_spec=grid_spec,
        compiler_params=pltpu.CompilerParams(
            dimension_semantics=("parallel",),
            vmem_limit_bytes=vmem_limit,
        ),
    )(xq2, xk2, xv2, wqkv, bqkv, wo, bo)

    # Free host-side unpacking back to the module's output layout.
    reps = reps2d.reshape(B, S, Dh)
    attn = attn2d.reshape(B, S, H, S).transpose(0, 2, 1, 3)
    return reps, attn


# ------------------------------ reference / test ------------------------------

def _init_linear(key, fan_in, fan_out):
    """nn.Linear-style init: U(-1/sqrt(fan_in), 1/sqrt(fan_in)).
    Weight returned already transposed to (fan_in, fan_out); bias (fan_out,)."""
    kw, kb = jax.random.split(key)
    bound = 1.0 / np.sqrt(fan_in)
    w = jax.random.uniform(kw, (fan_in, fan_out), jnp.float32, -bound, bound)
    b = jax.random.uniform(kb, (fan_out,), jnp.float32, -bound, bound)
    return w, b


def _reference(q_in, k_in, v_in, params, nr_heads, mask=False):
    """Pure-JAX f32 reference mirroring the PyTorch forward."""
    q = q_in @ params["wq"] + params["bq"]
    k = k_in @ params["wk"] + params["bk"]
    v = v_in @ params["wv"] + params["bv"]
    B, S, Dh = q.shape
    dh = Dh // nr_heads
    qh = q.reshape(B, S, nr_heads, dh).transpose(0, 2, 1, 3)
    kh = k.reshape(B, S, nr_heads, dh).transpose(0, 2, 1, 3)
    vh = v.reshape(B, S, nr_heads, dh).transpose(0, 2, 1, 3)
    scores = jnp.einsum("mnik,mnjk->mnij", qh, kh) / (float(dh) ** 0.5)
    if mask:
        tril = jnp.tril(jnp.ones((S, S), dtype=bool))
        scores = jnp.where(tril, scores, jnp.float32(-1e9))
    attn = jax.nn.softmax(scores, axis=-1)
    new = jnp.einsum("mnik,mnkj->mnij", attn, vh)
    reps = new.transpose(0, 2, 1, 3).reshape(B, S, Dh)
    reps = reps @ params["wo"] + params["bo"]
    return reps, attn


if __name__ == "__main__":
    batch, seq_len = 2, 8
    dim_input, dim_hidden, nr_heads = 16, 32, 4

    key = jax.random.PRNGKey(0)
    k_q, k_k, k_v, k_wq, k_wk, k_wv, k_wo = jax.random.split(key, 7)

    q_in = jax.random.normal(k_q, (batch, seq_len, dim_input), jnp.float32)
    k_in = jax.random.normal(k_k, (batch, seq_len, dim_input), jnp.float32)
    v_in = jax.random.normal(k_v, (batch, seq_len, dim_input), jnp.float32)

    wq, bq = _init_linear(k_wq, dim_input, dim_hidden)
    wk, bk = _init_linear(k_wk, dim_input, dim_hidden)
    wv, bv = _init_linear(k_wv, dim_input, dim_hidden)
    wo, bo = _init_linear(k_wo, dim_hidden, dim_hidden)
    params = dict(wq=wq, bq=bq, wk=wk, bk=bk, wv=wv, bv=bv, wo=wo, bo=bo)

    # bf16 MXU operands (f32 accumulation) vs f32 reference -> loosened tolerance
    tol = dict(rtol=2e-2, atol=2e-2)

    # non-masked path
    reps, attn = multi_head_attention(q_in, k_in, v_in, params,
                                      nr_heads=nr_heads, mask=False)
    jax.block_until_ready((reps, attn))
    reps_ref, attn_ref = _reference(q_in, k_in, v_in, params, nr_heads, mask=False)
    np.testing.assert_allclose(np.asarray(reps), np.asarray(reps_ref), **tol)
    np.testing.assert_allclose(np.asarray(attn), np.asarray(attn_ref), **tol)

    # causal-masked path
    reps_m, attn_m = multi_head_attention(q_in, k_in, v_in, params,
                                          nr_heads=nr_heads, mask=True)
    jax.block_until_ready((reps_m, attn_m))
    reps_ref_m, attn_ref_m = _reference(q_in, k_in, v_in, params, nr_heads, mask=True)
    np.testing.assert_allclose(np.asarray(reps_m), np.asarray(reps_ref_m), **tol)
    np.testing.assert_allclose(np.asarray(attn_m), np.asarray(attn_ref_m), **tol)

    print("KERNEL_OK")
</pallas_src>

<mosaic_0001>
module attributes {stable_mosaic.version = 11 : i64} {
  func.func @_mha_kernel(%arg0: i32, %arg1: memref<8x16xf32, #tpu.memory_space<vmem>>, %arg2: memref<8x16xf32, #tpu.memory_space<vmem>>, %arg3: memref<8x16xf32, #tpu.memory_space<vmem>>, %arg4: memref<3x16x32xbf16, #tpu.memory_space<vmem>>, %arg5: memref<3x1x32xf32, #tpu.memory_space<vmem>>, %arg6: memref<32x32xbf16, #tpu.memory_space<vmem>>, %arg7: memref<1x32xf32, #tpu.memory_space<vmem>>, %arg8: memref<8x32xf32, #tpu.memory_space<vmem>>, %arg9: memref<8x32xf32, #tpu.memory_space<vmem>>) attributes {dimension_semantics = [#tpu.dimension_semantics<parallel>], iteration_bounds = array<i64: 2>, scalar_prefetch = 0 : i64, scratch_operands = 0 : i64, tpu.core_type = #tpu.core_type<tc>, window_params = [{transform_indices = @transform_0, window_bounds = array<i64: 8, 16>}, {transform_indices = @transform_1, window_bounds = array<i64: 8, 16>}, {transform_indices = @transform_2, window_bounds = array<i64: 8, 16>}, {pipeline_mode = #tpu.pipeline_mode<synchronous>, transform_indices = @transform_3, window_bounds = array<i64: 3, 16, 32>}, {pipeline_mode = #tpu.pipeline_mode<synchronous>, transform_indices = @transform_4, window_bounds = array<i64: 3, 1, 32>}, {pipeline_mode = #tpu.pipeline_mode<synchronous>, transform_indices = @transform_5, window_bounds = array<i64: 32, 32>}, {pipeline_mode = #tpu.pipeline_mode<synchronous>, transform_indices = @transform_6, window_bounds = array<i64: 1, 32>}, {transform_indices = @transform_7, window_bounds = array<i64: 8, 32>}, {transform_indices = @transform_8, window_bounds = array<i64: 8, 32>}]} {
    %c0 = arith.constant 0 : index
    %c0_0 = arith.constant 0 : index
    %0 = vector.load %arg1[%c0, %c0_0] : memref<8x16xf32, #tpu.memory_space<vmem>>, vector<8x16xf32>
    %1 = arith.truncf %0 : vector<8x16xf32> to vector<8x16xbf16>
    %c0_1 = arith.constant 0 : index
    %c0_2 = arith.constant 0 : index
    %c0_3 = arith.constant 0 : index
    %2 = vector.load %arg4[%c0_1, %c0_2, %c0_3] : memref<3x16x32xbf16, #tpu.memory_space<vmem>>, vector<1x16x32xbf16>
    %3 = vector.shape_cast %2 : vector<1x16x32xbf16> to vector<16x32xbf16>
    %cst = arith.constant dense<0.000000e+00> : vector<8x32xf32>
    %4 = tpu.matmul %1, %3, %cst {dimension_numbers = #tpu.dot_dimension_numbers<[1], [0], [0], [1], [0, 0, 1, 1], [], []>} : vector<8x16xbf16>, vector<16x32xbf16>, vector<8x32xf32> -> vector<8x32xf32>
    %c0_4 = arith.constant 0 : index
    %c0_5 = arith.constant 0 : index
    %c0_6 = arith.constant 0 : index
    %5 = vector.load %arg5[%c0_4, %c0_5, %c0_6] : memref<3x1x32xf32, #tpu.memory_space<vmem>>, vector<1x1x32xf32>
    %6 = vector.shape_cast %5 : vector<1x1x32xf32> to vector<1x32xf32>
    %7 = vector.broadcast %6 : vector<1x32xf32> to vector<8x32xf32>
    %8 = arith.addf %4, %7 : vector<8x32xf32>
    %c0_7 = arith.constant 0 : index
    %c0_8 = arith.constant 0 : index
    %9 = vector.load %arg2[%c0_7, %c0_8] : memref<8x16xf32, #tpu.memory_space<vmem>>, vector<8x16xf32>
    %10 = arith.truncf %9 : vector<8x16xf32> to vector<8x16xbf16>
    %c1 = arith.constant 1 : index
    %c0_9 = arith.constant 0 : index
    %c0_10 = arith.constant 0 : index
    %11 = vector.load %arg4[%c1, %c0_9, %c0_10] : memref<3x16x32xbf16, #tpu.memory_space<vmem>>, vector<1x16x32xbf16>
    %12 = vector.shape_cast %11 : vector<1x16x32xbf16> to vector<16x32xbf16>
    %cst_11 = arith.constant dense<0.000000e+00> : vector<8x32xf32>
    %13 = tpu.matmul %10, %12, %cst_11 {dimension_numbers = #tpu.dot_dimension_numbers<[1], [0], [0], [1], [0, 0, 1, 1], [], []>} : vector<8x16xbf16>, vector<16x32xbf16>, vector<8x32xf32> -> vector<8x32xf32>
    %c1_12 = arith.constant 1 : index
    %c0_13 = arith.constant 0 : index
    %c0_14 = arith.constant 0 : index
    %14 = vector.load %arg5[%c1_12, %c0_13, %c0_14] : memref<3x1x32xf32, #tpu.memory_space<vmem>>, vector<1x1x32xf32>
    %15 = vector.shape_cast %14 : vector<1x1x32xf32> to vector<1x32xf32>
    %16 = vector.broadcast %15 : vector<1x32xf32> to vector<8x32xf32>
    %17 = arith.addf %13, %16 : vector<8x32xf32>
    %c0_15 = arith.constant 0 : index
    %c0_16 = arith.constant 0 : index
    %18 = vector.load %arg3[%c0_15, %c0_16] : memref<8x16xf32, #tpu.memory_space<vmem>>, vector<8x16xf32>
    %19 = arith.truncf %18 : vector<8x16xf32> to vector<8x16xbf16>
    %c2 = arith.constant 2 : index
    %c0_17 = arith.constant 0 : index
    %c0_18 = arith.constant 0 : index
    %20 = vector.load %arg4[%c2, %c0_17, %c0_18] : memref<3x16x32xbf16, #tpu.memory_space<vmem>>, vector<1x16x32xbf16>
    %21 = vector.shape_cast %20 : vector<1x16x32xbf16> to vector<16x32xbf16>
    %cst_19 = arith.constant dense<0.000000e+00> : vector<8x32xf32>
    %22 = tpu.matmul %19, %21, %cst_19 {dimension_numbers = #tpu.dot_dimension_numbers<[1], [0], [0], [1], [0, 0, 1, 1], [], []>} : vector<8x16xbf16>, vector<16x32xbf16>, vector<8x32xf32> -> vector<8x32xf32>
    %c2_20 = arith.constant 2 : index
    %c0_21 = arith.constant 0 : index
    %c0_22 = arith.constant 0 : index
    %23 = vector.load %arg5[%c2_20, %c0_21, %c0_22] : memref<3x1x32xf32, #tpu.memory_space<vmem>>, vector<1x1x32xf32>
    %24 = vector.shape_cast %23 : vector<1x1x32xf32> to vector<1x32xf32>
    %25 = vector.broadcast %24 : vector<1x32xf32> to vector<8x32xf32>
    %26 = arith.addf %22, %25 : vector<8x32xf32>
    %27 = vector.shape_cast %8 : vector<8x32xf32> to vector<1x8x32xf32>
    %28 = vector.shape_cast %17 : vector<8x32xf32> to vector<1x8x32xf32>
    %29 = vector.shape_cast %26 : vector<8x32xf32> to vector<1x8x32xf32>
    %c0_23 = arith.constant 0 : index
    %c0_24 = arith.constant 0 : index
    %30 = vector.load %arg6[%c0_23, %c0_24] : memref<32x32xbf16, #tpu.memory_space<vmem>>, vector<32x32xbf16>
    %cst_25 = arith.constant 0.000000e+00 : f32
    %31 = vector.broadcast %cst_25 : f32 to vector<8x32xf32>
    %32 = vector.extract_strided_slice %27 {offsets = [0, 0, 0], sizes = [1, 8, 8], strides = [1, 1, 1]} : vector<1x8x32xf32> to vector<1x8x8xf32>
    %33 = arith.truncf %32 : vector<1x8x8xf32> to vector<1x8x8xbf16>
    %34 = vector.extract_strided_slice %28 {offsets = [0, 0, 0], sizes = [1, 8, 8], strides = [1, 1, 1]} : vector<1x8x32xf32> to vector<1x8x8xf32>
    %35 = arith.truncf %34 : vector<1x8x8xf32> to vector<1x8x8xbf16>
    %36 = vector.extract_strided_slice %29 {offsets = [0, 0, 0], sizes = [1, 8, 8], strides = [1, 1, 1]} : vector<1x8x32xf32> to vector<1x8x8xf32>
    %37 = arith.truncf %36 : vector<1x8x8xf32> to vector<1x8x8xbf16>
    "tpu.trace_start"() <{level = 10 : i32, message = "bqd,bkd->bqk"}> : () -> ()
    %cst_26 = arith.constant dense<0.000000e+00> : vector<1x8x8xf32>
    %38 = tpu.matmul %33, %35, %cst_26 {dimension_numbers = #tpu.dot_dimension_numbers<[2], [2], [1], [1], [0, 0, 0, 1, 1, 1], [0], [0]>} : vector<1x8x8xbf16>, vector<1x8x8xbf16>, vector<1x8x8xf32> -> vector<1x8x8xf32>
    "tpu.trace_stop"() : () -> ()
    %cst_27 = arith.constant dense<0xFF800000> : vector<1x8xf32>
    %39 = vector.multi_reduction <maximumf>, %38, %cst_27 [2] : vector<1x8x8xf32> to vector<1x8xf32>
    %40 = vector.shape_cast %39 : vector<1x8xf32> to vector<1x8x1xf32>
    %41 = vector.broadcast %40 : vector<1x8x1xf32> to vector<1x8x8xf32>
    %42 = arith.subf %38, %41 : vector<1x8x8xf32>
    %43 = math.exp %42 : vector<1x8x8xf32>
    %cst_28 = arith.constant dense<0.000000e+00> : vector<1x8xf32>
    %44 = vector.multi_reduction <add>, %43, %cst_28 [2] : vector<1x8x8xf32> to vector<1x8xf32>
    %45 = vector.shape_cast %44 : vector<1x8xf32> to vector<1x8x1xf32>
    %46 = vector.broadcast %45 : vector<1x8x1xf32> to vector<1x8x8xf32>
    %47 = arith.divf %43, %46 : vector<1x8x8xf32>
    %48 = vector.shape_cast %47 : vector<1x8x8xf32> to vector<8x8xf32>
    %c0_29 = arith.constant 0 : index
    %c0_30 = arith.constant 0 : index
    %49 = vector.load %arg9[%c0_29, %c0_30] : memref<8x32xf32, #tpu.memory_space<vmem>>, vector<8x8xf32>
    tpu.vector_store %arg9[%c0_29, %c0_30], %48 {strides = array<i32>} : memref<8x32xf32, #tpu.memory_space<vmem>>, vector<8x8xf32>,
    %50 = arith.truncf %47 : vector<1x8x8xf32> to vector<1x8x8xbf16>
    "tpu.trace_start"() <{level = 10 : i32, message = "bqk,bkd->bqd"}> : () -> ()
    %cst_31 = arith.constant dense<0.000000e+00> : vector<1x8x8xf32>
    %51 = tpu.matmul %50, %37, %cst_31 {dimension_numbers = #tpu.dot_dimension_numbers<[2], [1], [1], [2], [0, 0, 0, 1, 1, 2], [0], [0]>} : vector<1x8x8xbf16>, vector<1x8x8xbf16>, vector<1x8x8xf32> -> vector<1x8x8xf32>
    "tpu.trace_stop"() : () -> ()
    %52 = vector.shape_cast %51 : vector<1x8x8xf32> to vector<8x8xf32>
    %53 = arith.truncf %52 : vector<8x8xf32> to vector<8x8xbf16>
    %54 = vector.extract_strided_slice %30 {offsets = [0, 0], sizes = [8, 32], strides = [1, 1]} : vector<32x32xbf16> to vector<8x32xbf16>
    %cst_32 = arith.constant dense<0.000000e+00> : vector<8x32xf32>
    %55 = tpu.matmul %53, %54, %cst_32 {dimension_numbers = #tpu.dot_dimension_numbers<[1], [0], [0], [1], [0, 0, 1, 1], [], []>} : vector<8x8xbf16>, vector<8x32xbf16>, vector<8x32xf32> -> vector<8x32xf32>
    %56 = arith.addf %31, %55 : vector<8x32xf32>
    %57 = vector.extract_strided_slice %27 {offsets = [0, 0, 8], sizes = [1, 8, 8], strides = [1, 1, 1]} : vector<1x8x32xf32> to vector<1x8x8xf32>
    %58 = arith.truncf %57 : vector<1x8x8xf32> to vector<1x8x8xbf16>
    %59 = vector.extract_strided_slice %28 {offsets = [0, 0, 8], sizes = [1, 8, 8], strides = [1, 1, 1]} : vector<1x8x32xf32> to vector<1x8x8xf32>
    %60 = arith.truncf %59 : vector<1x8x8xf32> to vector<1x8x8xbf16>
    %61 = vector.extract_strided_slice %29 {offsets = [0, 0, 8], sizes = [1, 8, 8], strides = [1, 1, 1]} : vector<1x8x32xf32> to vector<1x8x8xf32>
    %62 = arith.truncf %61 : vector<1x8x8xf32> to vector<1x8x8xbf16>
    "tpu.trace_start"() <{level = 10 : i32, message = "bqd,bkd->bqk"}> : () -> ()
    %cst_33 = arith.constant dense<0.000000e+00> : vector<1x8x8xf32>
    %63 = tpu.matmul %58, %60, %cst_33 {dimension_numbers = #tpu.dot_dimension_numbers<[2], [2], [1], [1], [0, 0, 0, 1, 1, 1], [0], [0]>} : vector<1x8x8xbf16>, vector<1x8x8xbf16>, vector<1x8x8xf32> -> vector<1x8x8xf32>
    "tpu.trace_stop"() : () -> ()
    %cst_34 = arith.constant dense<0xFF800000> : vector<1x8xf32>
    %64 = vector.multi_reduction <maximumf>, %63, %cst_34 [2] : vector<1x8x8xf32> to vector<1x8xf32>
    %65 = vector.shape_cast %64 : vector<1x8xf32> to vector<1x8x1xf32>
    %66 = vector.broadcast %65 : vector<1x8x1xf32> to vector<1x8x8xf32>
    %67 = arith.subf %63, %66 : vector<1x8x8xf32>
    %68 = math.exp %67 : vector<1x8x8xf32>
    %cst_35 = arith.constant dense<0.000000e+00> : vector<1x8xf32>
    %69 = vector.multi_reduction <add>, %68, %cst_35 [2] : vector<1x8x8xf32> to vector<1x8xf32>
    %70 = vector.shape_cast %69 : vector<1x8xf32> to vector<1x8x1xf32>
    %71 = vector.broadcast %70 : vector<1x8x1xf32> to vector<1x8x8xf32>
    %72 = arith.divf %68, %71 : vector<1x8x8xf32>
    %73 = vector.shape_cast %72 : vector<1x8x8xf32> to vector<8x8xf32>
    %c0_36 = arith.constant 0 : index
    %c8 = arith.constant 8 : index
    %74 = vector.load %arg9[%c0_36, %c8] : memref<8x32xf32, #tpu.memory_space<vmem>>, vector<8x8xf32>
    tpu.vector_store %arg9[%c0_36, %c8], %73 {strides = array<i32>} : memref<8x32xf32, #tpu.memory_space<vmem>>, vector<8x8xf32>,
    %75 = arith.truncf %72 : vector<1x8x8xf32> to vector<1x8x8xbf16>
    "tpu.trace_start"() <{level = 10 : i32, message = "bqk,bkd->bqd"}> : () -> ()
    %cst_37 = arith.constant dense<0.000000e+00> : vector<1x8x8xf32>
    %76 = tpu.matmul %75, %62, %cst_37 {dimension_numbers = #tpu.dot_dimension_numbers<[2], [1], [1], [2], [0, 0, 0, 1, 1, 2], [0], [0]>} : vector<1x8x8xbf16>, vector<1x8x8xbf16>, vector<1x8x8xf32> -> vector<1x8x8xf32>
    "tpu.trace_stop"() : () -> ()
    %77 = vector.shape_cast %76 : vector<1x8x8xf32> to vector<8x8xf32>
    %78 = arith.truncf %77 : vector<8x8xf32> to vector<8x8xbf16>
    %79 = vector.extract_strided_slice %30 {offsets = [8, 0], sizes = [8, 32], strides = [1, 1]} : vector<32x32xbf16> to vector<8x32xbf16>
    %cst_38 = arith.constant dense<0.000000e+00> : vector<8x32xf32>
    %80 = tpu.matmul %78, %79, %cst_38 {dimension_numbers = #tpu.dot_dimension_numbers<[1], [0], [0], [1], [0, 0, 1, 1], [], []>} : vector<8x8xbf16>, vector<8x32xbf16>, vector<8x32xf32> -> vector<8x32xf32>
    %81 = arith.addf %56, %80 : vector<8x32xf32>
    %82 = vector.extract_strided_slice %27 {offsets = [0, 0, 16], sizes = [1, 8, 8], strides = [1, 1, 1]} : vector<1x8x32xf32> to vector<1x8x8xf32>
    %83 = arith.truncf %82 : vector<1x8x8xf32> to vector<1x8x8xbf16>
    %84 = vector.extract_strided_slice %28 {offsets = [0, 0, 16], sizes = [1, 8, 8], strides = [1, 1, 1]} : vector<1x8x32xf32> to vector<1x8x8xf32>
    %85 = arith.truncf %84 : vector<1x8x8xf32> to vector<1x8x8xbf16>
    %86 = vector.extract_strided_slice %29 {offsets = [0, 0, 16], sizes = [1, 8, 8], strides = [1, 1, 1]} : vector<1x8x32xf32> to vector<1x8x8xf32>
    %87 = arith.truncf %86 : vector<1x8x8xf32> to vector<1x8x8xbf16>
    "tpu.trace_start"() <{level = 10 : i32, message = "bqd,bkd->bqk"}> : () -> ()
    %cst_39 = arith.constant dense<0.000000e+00> : vector<1x8x8xf32>
    %88 = tpu.matmul %83, %85, %cst_39 {dimension_numbers = #tpu.dot_dimension_numbers<[2], [2], [1], [1], [0, 0, 0, 1, 1, 1], [0], [0]>} : vector<1x8x8xbf16>, vector<1x8x8xbf16>, vector<1x8x8xf32> -> vector<1x8x8xf32>
    "tpu.trace_stop"() : () -> ()
    %cst_40 = arith.constant dense<0xFF800000> : vector<1x8xf32>
    %89 = vector.multi_reduction <maximumf>, %88, %cst_40 [2] : vector<1x8x8xf32> to vector<1x8xf32>
    %90 = vector.shape_cast %89 : vector<1x8xf32> to vector<1x8x1xf32>
    %91 = vector.broadcast %90 : vector<1x8x1xf32> to vector<1x8x8xf32>
    %92 = arith.subf %88, %91 : vector<1x8x8xf32>
    %93 = math.exp %92 : vector<1x8x8xf32>
    %cst_41 = arith.constant dense<0.000000e+00> : vector<1x8xf32>
    %94 = vector.multi_reduction <add>, %93, %cst_41 [2] : vector<1x8x8xf32> to vector<1x8xf32>
    %95 = vector.shape_cast %94 : vector<1x8xf32> to vector<1x8x1xf32>
    %96 = vector.broadcast %95 : vector<1x8x1xf32> to vector<1x8x8xf32>
    %97 = arith.divf %93, %96 : vector<1x8x8xf32>
    %98 = vector.shape_cast %97 : vector<1x8x8xf32> to vector<8x8xf32>
    %c0_42 = arith.constant 0 : index
    %c16 = arith.constant 16 : index
    %99 = vector.load %arg9[%c0_42, %c16] : memref<8x32xf32, #tpu.memory_space<vmem>>, vector<8x8xf32>
    tpu.vector_store %arg9[%c0_42, %c16], %98 {strides = array<i32>} : memref<8x32xf32, #tpu.memory_space<vmem>>, vector<8x8xf32>,
    %100 = arith.truncf %97 : vector<1x8x8xf32> to vector<1x8x8xbf16>
    "tpu.trace_start"() <{level = 10 : i32, message = "bqk,bkd->bqd"}> : () -> ()
    %cst_43 = arith.constant dense<0.000000e+00> : vector<1x8x8xf32>
    %101 = tpu.matmul %100, %87, %cst_43 {dimension_numbers = #tpu.dot_dimension_numbers<[2], [1], [1], [2], [0, 0, 0, 1, 1, 2], [0], [0]>} : vector<1x8x8xbf16>, vector<1x8x8xbf16>, vector<1x8x8xf32> -> vector<1x8x8xf32>
    "tpu.trace_stop"() : () -> ()
    %102 = vector.shape_cast %101 : vector<1x8x8xf32> to vector<8x8xf32>
    %103 = arith.truncf %102 : vector<8x8xf32> to vector<8x8xbf16>
    %104 = vector.extract_strided_slice %30 {offsets = [16, 0], sizes = [8, 32], strides = [1, 1]} : vector<32x32xbf16> to vector<8x32xbf16>
    %cst_44 = arith.constant dense<0.000000e+00> : vector<8x32xf32>
    %105 = tpu.matmul %103, %104, %cst_44 {dimension_numbers = #tpu.dot_dimension_numbers<[1], [0], [0], [1], [0, 0, 1, 1], [], []>} : vector<8x8xbf16>, vector<8x32xbf16>, vector<8x32xf32> -> vector<8x32xf32>
    %106 = arith.addf %81, %105 : vector<8x32xf32>
    %107 = vector.extract_strided_slice %27 {offsets = [0, 0, 24], sizes = [1, 8, 8], strides = [1, 1, 1]} : vector<1x8x32xf32> to vector<1x8x8xf32>
    %108 = arith.truncf %107 : vector<1x8x8xf32> to vector<1x8x8xbf16>
    %109 = vector.extract_strided_slice %28 {offsets = [0, 0, 24], sizes = [1, 8, 8], strides = [1, 1, 1]} : vector<1x8x32xf32> to vector<1x8x8xf32>
    %110 = arith.truncf %109 : vector<1x8x8xf32> to vector<1x8x8xbf16>
    %111 = vector.extract_strided_slice %29 {offsets = [0, 0, 24], sizes = [1, 8, 8], strides = [1, 1, 1]} : vector<1x8x32xf32> to vector<1x8x8xf32>
    %112 = arith.truncf %111 : vector<1x8x8xf32> to vector<1x8x8xbf16>
    "tpu.trace_start"() <{level = 10 : i32, message = "bqd,bkd->bqk"}> : () -> ()
    %cst_45 = arith.constant dense<0.000000e+00> : vector<1x8x8xf32>
    %113 = tpu.matmul %108, %110, %cst_45 {dimension_numbers = #tpu.dot_dimension_numbers<[2], [2], [1], [1], [0, 0, 0, 1, 1, 1], [0], [0]>} : vector<1x8x8xbf16>, vector<1x8x8xbf16>, vector<1x8x8xf32> -> vector<1x8x8xf32>
    "tpu.trace_stop"() : () -> ()
    %cst_46 = arith.constant dense<0xFF800000> : vector<1x8xf32>
    %114 = vector.multi_reduction <maximumf>, %113, %cst_46 [2] : vector<1x8x8xf32> to vector<1x8xf32>
    %115 = vector.shape_cast %114 : vector<1x8xf32> to vector<1x8x1xf32>
    %116 = vector.broadcast %115 : vector<1x8x1xf32> to vector<1x8x8xf32>
    %117 = arith.subf %113, %116 : vector<1x8x8xf32>
    %118 = math.exp %117 : vector<1x8x8xf32>
    %cst_47 = arith.constant dense<0.000000e+00> : vector<1x8xf32>
    %119 = vector.multi_reduction <add>, %118, %cst_47 [2] : vector<1x8x8xf32> to vector<1x8xf32>
    %120 = vector.shape_cast %119 : vector<1x8xf32> to vector<1x8x1xf32>
    %121 = vector.broadcast %120 : vector<1x8x1xf32> to vector<1x8x8xf32>
    %122 = arith.divf %118, %121 : vector<1x8x8xf32>
    %123 = vector.shape_cast %122 : vector<1x8x8xf32> to vector<8x8xf32>
    %c0_48 = arith.constant 0 : index
    %c24 = arith.constant 24 : index
    %124 = vector.load %arg9[%c0_48, %c24] : memref<8x32xf32, #tpu.memory_space<vmem>>, vector<8x8xf32>
    tpu.vector_store %arg9[%c0_48, %c24], %123 {strides = array<i32>} : memref<8x32xf32, #tpu.memory_space<vmem>>, vector<8x8xf32>,
    %125 = arith.truncf %122 : vector<1x8x8xf32> to vector<1x8x8xbf16>
    "tpu.trace_start"() <{level = 10 : i32, message = "bqk,bkd->bqd"}> : () -> ()
    %cst_49 = arith.constant dense<0.000000e+00> : vector<1x8x8xf32>
    %126 = tpu.matmul %125, %112, %cst_49 {dimension_numbers = #tpu.dot_dimension_numbers<[2], [1], [1], [2], [0, 0, 0, 1, 1, 2], [0], [0]>} : vector<1x8x8xbf16>, vector<1x8x8xbf16>, vector<1x8x8xf32> -> vector<1x8x8xf32>
    "tpu.trace_stop"() : () -> ()
    %127 = vector.shape_cast %126 : vector<1x8x8xf32> to vector<8x8xf32>
    %128 = arith.truncf %127 : vector<8x8xf32> to vector<8x8xbf16>
    %129 = vector.extract_strided_slice %30 {offsets = [24, 0], sizes = [8, 32], strides = [1, 1]} : vector<32x32xbf16> to vector<8x32xbf16>
    %cst_50 = arith.constant dense<0.000000e+00> : vector<8x32xf32>
    %130 = tpu.matmul %128, %129, %cst_50 {dimension_numbers = #tpu.dot_dimension_numbers<[1], [0], [0], [1], [0, 0, 1, 1], [], []>} : vector<8x8xbf16>, vector<8x32xbf16>, vector<8x32xf32> -> vector<8x32xf32>
    %131 = arith.addf %106, %130 : vector<8x32xf32>
    %c0_51 = arith.constant 0 : index
    %c0_52 = arith.constant 0 : index
    %132 = vector.load %arg7[%c0_51, %c0_52] : memref<1x32xf32, #tpu.memory_space<vmem>>, vector<1x32xf32>
    %133 = vector.broadcast %132 : vector<1x32xf32> to vector<8x32xf32>
    %134 = arith.addf %131, %133 : vector<8x32xf32>
    %c0_53 = arith.constant 0 : index
    %c0_54 = arith.constant 0 : index
    %135 = vector.load %arg8[%c0_53, %c0_54] : memref<8x32xf32, #tpu.memory_space<vmem>>, vector<8x32xf32>
    tpu.vector_store %arg8[%c0_53, %c0_54], %134 {strides = array<i32>} : memref<8x32xf32, #tpu.memory_space<vmem>>, vector<8x32xf32>,
    return
  }
  func.func @transform_0(%arg0: i32) -> (i32, i32) {
    %c0_i32 = arith.constant 0 : i32
    %c0_i32_0 = arith.constant 0 : i32
    return %arg0, %c0_i32 : i32, i32
  }
  func.func @transform_1(%arg0: i32) -> (i32, i32) {
    %c0_i32 = arith.constant 0 : i32
    %c0_i32_0 = arith.constant 0 : i32
    return %arg0, %c0_i32 : i32, i32
  }
  func.func @transform_2(%arg0: i32) -> (i32, i32) {
    %c0_i32 = arith.constant 0 : i32
    %c0_i32_0 = arith.constant 0 : i32
    return %arg0, %c0_i32 : i32, i32
  }
  func.func @transform_3(%arg0: i32) -> (i32, i32, i32) {
    %c0_i32 = arith.constant 0 : i32
    %c0_i32_0 = arith.constant 0 : i32
    %c0_i32_1 = arith.constant 0 : i32
    %c0_i32_2 = arith.constant 0 : i32
    return %c0_i32, %c0_i32_0, %c0_i32_1 : i32, i32, i32
  }
  func.func @transform_4(%arg0: i32) -> (i32, i32, i32) {
    %c0_i32 = arith.constant 0 : i32
    %c0_i32_0 = arith.constant 0 : i32
    %c0_i32_1 = arith.constant 0 : i32
    %c0_i32_2 = arith.constant 0 : i32
    return %c0_i32, %c0_i32_0, %c0_i32_1 : i32, i32, i32
  }
  func.func @transform_5(%arg0: i32) -> (i32, i32) {
    %c0_i32 = arith.constant 0 : i32
    %c0_i32_0 = arith.constant 0 : i32
    %c0_i32_1 = arith.constant 0 : i32
    return %c0_i32, %c0_i32_0 : i32, i32
  }
  func.func @transform_6(%arg0: i32) -> (i32, i32) {
    %c0_i32 = arith.constant 0 : i32
    %c0_i32_0 = arith.constant 0 : i32
    %c0_i32_1 = arith.constant 0 : i32
    return %c0_i32, %c0_i32_0 : i32, i32
  }
  func.func @transform_7(%arg0: i32) -> (i32, i32) {
    %c0_i32 = arith.constant 0 : i32
    %c0_i32_0 = arith.constant 0 : i32
    return %arg0, %c0_i32 : i32, i32
  }
  func.func @transform_8(%arg0: i32) -> (i32, i32) {
    %c0_i32 = arith.constant 0 : i32
    %c0_i32_0 = arith.constant 0 : i32
    return %arg0, %c0_i32 : i32, i32
  }
}

</mosaic_0001>

<llo_original>
// kernel: tpu_custom_call.1
$region0: #{tpu_custom_call.1}
  #allocation0 [shape = 'u32[]', space=smem, size = 0x4, offset = 0x4, fixed_abs, tag = 'smem constant byte address 0x4 - core index']
  #allocation1 [shape = 'u32[144,128]{1,0:T(1,128)}', space=vmem, size = 0x12000, scoped, tag = 'internal scratch']
  %s0 = inlined_call_operand.hbm [shape: f32[16,16], index: 0, kind: input, shape index: {}]
  %s1 = inlined_call_operand.hbm [shape: f32[16,16], index: 1, kind: input, shape index: {}]
  %s2 = inlined_call_operand.hbm [shape: f32[16,16], index: 2, kind: input, shape index: {}]
  %s3 = inlined_call_operand.hbm [shape: bf16[3,16,32], index: 3, kind: input, shape index: {}]
  %s4 = inlined_call_operand.hbm [shape: f32[3,1,32], index: 4, kind: input, shape index: {}]
  %s5 = inlined_call_operand.vmem [shape: bf16[32,32], index: 5, kind: input, shape index: {}]
  %s6 = inlined_call_operand.vmem [shape: f32[1,32], index: 6, kind: input, shape index: {}]
  %s7 = inlined_call_operand.hbm [shape: f32[16,32], index: 7, kind: output, shape index: {0}]
  %s8 = inlined_call_operand.hbm [shape: f32[16,32], index: 8, kind: output, shape index: {1}]
  %9 = xla_tuple %s7, %s8
  %s10 = sld [smem:[#allocation0]]
  $region89: #{tpu_custom_call.1} parent=0
    _
  %s12 = ssub.s32 1, %s10
  %s13 = scalar_select 0, %s12, %s10
  $region1: #{tpu_custom_call.1} parent=0
    #allocation2 [shape = 'u8[8192]{0}', space=vmem, size = 0x2000, scoped, tag = 'input window, operand 0']
    #allocation3 [shape = 's32[2]{0}', space=sflag, size = 0x8, scoped, tag = 'scoped memory for tpu_custom_call.1']
    #allocation4 [shape = 's32[2]{0}', space=sflag, size = 0x8, scoped, tag = 'scoped memory for tpu_custom_call.1']
    #allocation5 [shape = 'u8[8192]{0}', space=vmem, size = 0x2000, scoped, tag = 'input window, operand 1']
    #allocation6 [shape = 's32[2]{0}', space=sflag, size = 0x8, scoped, tag = 'scoped memory for tpu_custom_call.1']
    #allocation7 [shape = 'u8[8192]{0}', space=vmem, size = 0x2000, scoped, tag = 'input window, operand 2']
    #allocation8 [shape = 'u8[12288]{0}', space=vmem, size = 0x3000, scoped, tag = 'input window, operand 3, single buffered']
    #allocation9 [shape = 's32[1]{0}', space=sflag, size = 0x4, scoped, tag = 'scoped memory for tpu_custom_call.1']
    #allocation10 [shape = 'u8[1536]{0}', space=vmem, size = 0x800, scoped, tag = 'input window, operand 4, single buffered']
    #allocation11 [shape = 'u8[8192]{0}', space=vmem, size = 0x2000, scoped, tag = 'output window, operand 0']
    #allocation12 [shape = 'u8[8192]{0}', space=vmem, size = 0x2000, scoped, tag = 'output window, operand 1']
    #allocation13 [shape = 's32[2]{0}', space=sflag, size = 0x8, scoped, tag = 'scoped memory for tpu_custom_call.1']
    %14 = vsyncpa [#allocation3], 0
    %s15 = scalar_lea.sflag [#allocation3], 1
    %16 = vsyncpa %s15, 0
    %17 = vsyncpa [#allocation6], 0
    %s18 = scalar_lea.sflag [#allocation6], 1
    %19 = vsyncpa %s18, 0
    %20 = vsyncpa [#allocation9], 0
    %21 = vsyncpa [#allocation4], 0
    %s22 = scalar_lea.sflag [#allocation4], 1
    %23 = vsyncpa %s22, 0
    %24 = vsyncpa [#allocation13], 0
    %s25 = scalar_lea.sflag [#allocation13], 1
    %26 = vsyncpa %s25, 0
    loop: start=0, step=1, limit=4
    $region2: #{tpu_custom_call.1} parent=1 // loop_pre_header
      _
    $region3: #{tpu_custom_call.1} parent=1 // loop_header
      %s28 = sphi 0, %s32
      %p29 = scmp.ge.s32.totalorder %s28, 4
      %s38 = sphi 0, %s40
      %s41 = sphi 0, %s38
      %s42 = sphi 0, %s41
      %s58 = sphi 0, %s42
      %s64 = sphi 0, %s66
      %s67 = sphi 0, %s64
      %s68 = sphi 0, %s67
      %s84 = sphi 0, %s68
      %s90 = sphi 0, %s92
      %s93 = sphi 0, %s90
      %s94 = sphi 0, %s93
      %s110 = sphi 0, %s94
      %s114 = sphi 0, %s114
      %s116 = sphi 0, %s114
      %s117 = sphi 0, %s116
      %s131 = sphi 0, %s117
      %s135 = sphi 0, %s135
      %s137 = sphi 0, %s135
      %s138 = sphi 0, %s137
      %s152 = sphi 0, %s138
      %s156 = sphi 0, %s156
      %s158 = sphi 0, %s156
      %s159 = sphi 0, %s158
      %s173 = sphi 0, %s159
      %s177 = sphi 0, %s177
      %s179 = sphi 0, %s177
      %s180 = sphi 0, %s179
      %s194 = sphi 0, %s180
      %s200 = sphi 0, %s202
      %s203 = sphi 0, %s200
      %s204 = sphi 0, %s203
      %s220 = sphi 0, %s204
      %s226 = sphi 0, %s228
      %s229 = sphi 0, %s226
      %s230 = sphi 0, %s229
      %s246 = sphi 0, %s230
    $region4: #{tpu_custom_call.1} parent=1 // loop_header_branch
      %31 = sbr.rel (%p29) target = $region8
    $region5: #{tpu_custom_call.1} parent=1 // loop_body
      %s33 = ssub.s32 %s28, 1
      %s34 = ssub.s32 %s28, 2
      %s35 = sadd.s32 %s28, 1
      %s36 = ssub.s32 %s28, %s35
      %p37 = scmp.eq.s32.totalorder %s36, 0
      %s39 = sadd.s32 %s38, 1
      %s40 = scalar_select %p37, %s38, %s39
      %p43 = pneg %p37
      %p44 = scmp.eq.s32.totalorder %s28, 1
      %p45 = por %p43, %p44
      %p46 = scmp.ne.s32.totalorder %s38, %s41
      %p47 = scmp.eq.s32.totalorder %s28, 0
      %p48 = por %p46, %p47
      %p49 = scmp.ne.s32.totalorder %s38, %s41
      %p50 = scmp.eq.s32.totalorder %s33, 1
      %p51 = por %p49, %p50
      %p52 = scmp.ne.s32.totalorder %s41, %s42
      %p53 = scmp.eq.s32.totalorder %s33, 0
      %p54 = por %p52, %p53
      %p55 = scmp.ne.s32.totalorder %s41, %s42
      %p56 = scmp.eq.s32.totalorder %s34, 1
      %p57 = por %p55, %p56
      %p59 = scmp.ne.s32.totalorder %s42, %s58
      %p60 = scmp.eq.s32.totalorder %s34, 0
      %p61 = por %p59, %p60
      %s62 = ssub.s32 %s28, %s35
      %p63 = scmp.eq.s32.totalorder %s62, 0
      %s65 = sadd.s32 %s64, 1
      %s66 = scalar_select %p63, %s64, %s65
      %p69 = pneg %p63
      %p70 = scmp.eq.s32.totalorder %s28, 1
      %p71 = por %p69, %p70
      %p72 = scmp.ne.s32.totalorder %s64, %s67
      %p73 = scmp.eq.s32.totalorder %s28, 0
      %p74 = por %p72, %p73
      %p75 = scmp.ne.s32.totalorder %s64, %s67
      %p76 = scmp.eq.s32.totalorder %s33, 1
      %p77 = por %p75, %p76
      %p78 = scmp.ne.s32.totalorder %s67, %s68
      %p79 = scmp.eq.s32.totalorder %s33, 0
      %p80 = por %p78, %p79
      %p81 = scmp.ne.s32.totalorder %s67, %s68
      %p82 = scmp.eq.s32.totalorder %s34, 1
      %p83 = por %p81, %p82
      %p85 = scmp.ne.s32.totalorder %s68, %s84
      %p86 = scmp.eq.s32.totalorder %s34, 0
      %p87 = por %p85, %p86
      %s88 = ssub.s32 %s28, %s35
      %p89 = scmp.eq.s32.totalorder %s88, 0
      %s91 = sadd.s32 %s90, 1
      %s92 = scalar_select %p89, %s90, %s91
      %p95 = pneg %p89
      %p96 = scmp.eq.s32.totalorder %s28, 1
      %p97 = por %p95, %p96
      %p98 = scmp.ne.s32.totalorder %s90, %s93
      %p99 = scmp.eq.s32.totalorder %s28, 0
      %p100 = por %p98, %p99
      %p101 = scmp.ne.s32.totalorder %s90, %s93
      %p102 = scmp.eq.s32.totalorder %s33, 1
      %p103 = por %p101, %p102
      %p104 = scmp.ne.s32.totalorder %s93, %s94
      %p105 = scmp.eq.s32.totalorder %s33, 0
      %p106 = por %p104, %p105
      %p107 = scmp.ne.s32.totalorder %s93, %s94
      %p108 = scmp.eq.s32.totalorder %s34, 1
      %p109 = por %p107, %p108
      %p111 = scmp.ne.s32.totalorder %s94, %s110
      %p112 = scmp.eq.s32.totalorder %s34, 0
      %p113 = por %p111, %p112
      %s115 = sadd.s32 %s114, 1
      %p118 = scmp.eq.s32.totalorder %s28, 1
      %p119 = scmp.ne.s32.totalorder %s114, %s116
      %p120 = scmp.eq.s32.totalorder %s28, 0
      %p121 = por %p119, %p120
      %p122 = scmp.ne.s32.totalorder %s114, %s116
      %p123 = scmp.eq.s32.totalorder %s33, 1
      %p124 = por %p122, %p123
      %p125 = scmp.ne.s32.totalorder %s116, %s117
      %p126 = scmp.eq.s32.totalorder %s33, 0
      %p127 = por %p125, %p126
      %p128 = scmp.ne.s32.totalorder %s116, %s117
      %p129 = scmp.eq.s32.totalorder %s34, 1
      %p130 = por %p128, %p129
      %p132 = scmp.ne.s32.totalorder %s117, %s131
      %p133 = scmp.eq.s32.totalorder %s34, 0
      %p134 = por %p132, %p133
      %s136 = sadd.s32 %s135, 1
      %p139 = scmp.eq.s32.totalorder %s28, 1
      %p140 = scmp.ne.s32.totalorder %s135, %s137
      %p141 = scmp.eq.s32.totalorder %s28, 0
      %p142 = por %p140, %p141
      %p143 = scmp.ne.s32.totalorder %s135, %s137
      %p144 = scmp.eq.s32.totalorder %s33, 1
      %p145 = por %p143, %p144
      %p146 = scmp.ne.s32.totalorder %s137, %s138
      %p147 = scmp.eq.s32.totalorder %s33, 0
      %p148 = por %p146, %p147
      %p149 = scmp.ne.s32.totalorder %s137, %s138
      %p150 = scmp.eq.s32.totalorder %s34, 1
      %p151 = por %p149, %p150
      %p153 = scmp.ne.s32.totalorder %s138, %s152
      %p154 = scmp.eq.s32.totalorder %s34, 0
      %p155 = por %p153, %p154
      %s157 = sadd.s32 %s156, 1
      %p160 = scmp.eq.s32.totalorder %s28, 1
      %p161 = scmp.ne.s32.totalorder %s156, %s158
      %p162 = scmp.eq.s32.totalorder %s28, 0
      %p163 = por %p161, %p162
      %p164 = scmp.ne.s32.totalorder %s156, %s158
      %p165 = scmp.eq.s32.totalorder %s33, 1
      %p166 = por %p164, %p165
      %p167 = scmp.ne.s32.totalorder %s158, %s159
      %p168 = scmp.eq.s32.totalorder %s33, 0
      %p169 = por %p167, %p168
      %p170 = scmp.ne.s32.totalorder %s158, %s159
      %p171 = scmp.eq.s32.totalorder %s34, 1
      %p172 = por %p170, %p171
      %p174 = scmp.ne.s32.totalorder %s159, %s173
      %p175 = scmp.eq.s32.totalorder %s34, 0
      %p176 = por %p174, %p175
      %s178 = sadd.s32 %s177, 1
      %p181 = scmp.eq.s32.totalorder %s28, 1
      %p182 = scmp.ne.s32.totalorder %s177, %s179
      %p183 = scmp.eq.s32.totalorder %s28, 0
      %p184 = por %p182, %p183
      %p185 = scmp.ne.s32.totalorder %s177, %s179
      %p186 = scmp.eq.s32.totalorder %s33, 1
      %p187 = por %p185, %p186
      %p188 = scmp.ne.s32.totalorder %s179, %s180
      %p189 = scmp.eq.s32.totalorder %s33, 0
      %p190 = por %p188, %p189
      %p191 = scmp.ne.s32.totalorder %s179, %s180
      %p192 = scmp.eq.s32.totalorder %s34, 1
      %p193 = por %p191, %p192
      %p195 = scmp.ne.s32.totalorder %s180, %s194
      %p196 = scmp.eq.s32.totalorder %s34, 0
      %p197 = por %p195, %p196
      %s198 = ssub.s32 %s28, %s35
      %p199 = scmp.eq.s32.totalorder %s198, 0
      %s201 = sadd.s32 %s200, 1
      %s202 = scalar_select %p199, %s200, %s201
      %p205 = pneg %p199
      %p206 = scmp.eq.s32.totalorder %s28, 1
      %p207 = por %p205, %p206
      %p208 = scmp.ne.s32.totalorder %s200, %s203
      %p209 = scmp.eq.s32.totalorder %s28, 0
      %p210 = por %p208, %p209
      %p211 = scmp.ne.s32.totalorder %s200, %s203
      %p212 = scmp.eq.s32.totalorder %s33, 1
      %p213 = por %p211, %p212
      %p214 = scmp.ne.s32.totalorder %s203, %s204
      %p215 = scmp.eq.s32.totalorder %s33, 0
      %p216 = por %p214, %p215
      %p217 = scmp.ne.s32.totalorder %s203, %s204
      %p218 = scmp.eq.s32.totalorder %s34, 1
      %p219 = por %p217, %p218
      %p221 = scmp.ne.s32.totalorder %s204, %s220
      %p222 = scmp.eq.s32.totalorder %s34, 0
      %p223 = por %p221, %p222
      %s224 = ssub.s32 %s28, %s35
      %p225 = scmp.eq.s32.totalorder %s224, 0
      %s227 = sadd.s32 %s226, 1
      %s228 = scalar_select %p225, %s226, %s227
      %p231 = pneg %p225
      %p232 = scmp.eq.s32.totalorder %s28, 1
      %p233 = por %p231, %p232
      %p234 = scmp.ne.s32.totalorder %s226, %s229
      %p235 = scmp.eq.s32.totalorder %s28, 0
      %p236 = por %p234, %p235
      %p237 = scmp.ne.s32.totalorder %s226, %s229
      %p238 = scmp.eq.s32.totalorder %s33, 1
      %p239 = por %p237, %p238
      %p240 = scmp.ne.s32.totalorder %s229, %s230
      %p241 = scmp.eq.s32.totalorder %s33, 0
      %p242 = por %p240, %p241
      %p243 = scmp.ne.s32.totalorder %s229, %s230
      %p244 = scmp.eq.s32.totalorder %s34, 1
      %p245 = por %p243, %p244
      %p247 = scmp.ne.s32.totalorder %s230, %s246
      %p248 = scmp.eq.s32.totalorder %s34, 0
      %p249 = por %p247, %p248
      %p250 = scmp.le.s32.totalorder 1, %s28
      %p251 = scmp.lt.s32.totalorder %s28, 3
      %p252 = pnand %p250, %p251
      %p253 = pneg %p252
      // Predicated region
      $region9: #{tpu_custom_call.1} parent=5 // pred_check
        _
      $region10: #{tpu_custom_call.1} parent=5 // pred_check_branch
        %255 = sbr.rel (%p252) target = $region12
      $region11: #{tpu_custom_call.1} parent=5 // pred_region
        %s256 = ssub.s32 %s28, 1
        // Predicated region
        $region13: #{tpu_custom_call.1} parent=11 // pred_check
          %p257 = pneg %p127
        $region14: #{tpu_custom_call.1} parent=11 // pred_check_branch
          %259 = sbr.rel (%p257) target = $region16
        $region15: #{tpu_custom_call.1} parent=11 // pred_region
          %s261 = ssub.s32 384, 384
          %262 = vsyncadd [#allocation9], %s261
          %s263 = sshll.u32 [#allocation8], 4
          %s264 = int_to_ptr.vmem [resolvable:$true] %s263
          %269 = dma.hbm_to_vmem [thread:$0]  %s3, 384, %s264, [#allocation9], 64, 64, 4
        $region16: #{tpu_custom_call.1} parent=11 // pred_fallthru
          _
        // Predicated region
        $region17: #{tpu_custom_call.1} parent=11 // pred_check
          %p270 = pneg %p148
        $region18: #{tpu_custom_call.1} parent=11 // pred_check_branch
          %272 = sbr.rel (%p270) target = $region20
        $region19: #{tpu_custom_call.1} parent=11 // pred_region
          %s274 = ssub.s32 48, 48
          %275 = vsyncadd [#allocation9], %s274
          %s276 = sshll.u32 [#allocation10], 4
          %s277 = int_to_ptr.vmem [resolvable:$true] %s276
          %282 = dma.hbm_to_vmem [thread:$0]  %s4, 48, %s277, [#allocation9], 16, 16, 1
        $region20: #{tpu_custom_call.1} parent=11 // pred_fallthru
          _
        // Predicated region
        $region21: #{tpu_custom_call.1} parent=11 // pred_check
          %p283 = pneg %p169
        $region22: #{tpu_custom_call.1} parent=11 // pred_check_branch
          %285 = sbr.rel (%p283) target = $region24
        $region23: #{tpu_custom_call.1} parent=11 // pred_region
          _
        $region24: #{tpu_custom_call.1} parent=11 // pred_fallthru
          _
        // Predicated region
        $region25: #{tpu_custom_call.1} parent=11 // pred_check
          %p286 = pneg %p190
        $region26: #{tpu_custom_call.1} parent=11 // pred_check_branch
          %288 = sbr.rel (%p286) target = $region28
        $region27: #{tpu_custom_call.1} parent=11 // pred_region
          _
        $region28: #{tpu_custom_call.1} parent=11 // pred_fallthru
          _
      $region12: #{tpu_custom_call.1} parent=5 // pred_fallthru
        _
      %p289 = scmp.lt.s32.totalorder %s28, 2
      // Predicated region
      $region29: #{tpu_custom_call.1} parent=5 // pred_check
        %p290 = pneg %p289
      $region30: #{tpu_custom_call.1} parent=5 // pred_check_branch
        %292 = sbr.rel (%p290) target = $region32
      $region31: #{tpu_custom_call.1} parent=5 // pred_region
        // Predicated region
        $region33: #{tpu_custom_call.1} parent=31 // pred_check
          %p293 = pneg %p48
        $region34: #{tpu_custom_call.1} parent=31 // pred_check_branch
          %295 = sbr.rel (%p293) target = $region36
        $region35: #{tpu_custom_call.1} parent=31 // pred_region
          %s296 = sand.u32 %s38, 1
          %s297 = scalar_lea.sflag [#allocation3], %s296
          %s298 = sand.u32 %s38, 1
          %s299 = smul.addr %s298, 8
          %s300 = scalar_lea.vmem [#allocation2], %s299
          %s302 = ssub.s32 128, 128
          %303 = vsyncadd %s297, %s302
          %s304 = smul.addr %s28, 128
          %s305 = scalar_lea.hbm %s0, %s304
          %s307 = sshll.u32 %s300, 4
          %s308 = int_to_ptr.vmem [resolvable:$true] %s307
          %310 = dma.hbm_to_vmem [thread:$0]  %s305, 128, %s308, %s297
        $region36: #{tpu_custom_call.1} parent=31 // pred_fallthru
          _
        // Predicated region
        $region37: #{tpu_custom_call.1} parent=31 // pred_check
          %p311 = pneg %p74
        $region38: #{tpu_custom_call.1} parent=31 // pred_check_branch
          %313 = sbr.rel (%p311) target = $region40
        $region39: #{tpu_custom_call.1} parent=31 // pred_region
          %s314 = sand.u32 %s28, 1
          %s315 = scalar_lea.sflag [#allocation6], %s314
          %s316 = sand.u32 %s64, 1
          %s317 = smul.addr %s316, 8
          %s318 = scalar_lea.vmem [#allocation5], %s317
          %s320 = ssub.s32 128, 128
          %321 = vsyncadd %s315, %s320
          %s322 = smul.addr %s28, 128
          %s323 = scalar_lea.hbm %s1, %s322
          %s325 = sshll.u32 %s318, 4
          %s326 = int_to_ptr.vmem [resolvable:$true] %s325
          %328 = dma.hbm_to_vmem [thread:$0]  %s323, 128, %s326, %s315
        $region40: #{tpu_custom_call.1} parent=31 // pred_fallthru
          _
        // Predicated region
        $region41: #{tpu_custom_call.1} parent=31 // pred_check
          %p329 = pneg %p100
        $region42: #{tpu_custom_call.1} parent=31 // pred_check_branch
          %331 = sbr.rel (%p329) target = $region44
        $region43: #{tpu_custom_call.1} parent=31 // pred_region
          %s332 = sand.u32 %s28, 1
          %s333 = scalar_lea.sflag [#allocation6], %s332
          %s334 = sand.u32 %s90, 1
          %s335 = smul.addr %s334, 8
          %s336 = scalar_lea.vmem [#allocation7], %s335
          %s338 = ssub.s32 128, 128
          %339 = vsyncadd %s333, %s338
          %s340 = smul.addr %s28, 128
          %s341 = scalar_lea.hbm %s2, %s340
          %s343 = sshll.u32 %s336, 4
          %s344 = int_to_ptr.vmem [resolvable:$true] %s343
          %346 = dma.hbm_to_vmem [thread:$0]  %s341, 128, %s344, %s333
        $region44: #{tpu_custom_call.1} parent=31 // pred_fallthru
          _
      $region32: #{tpu_custom_call.1} parent=5 // pred_fallthru
        _
      %p347 = scmp.le.s32.totalorder 1, %s28
      %p348 = scmp.lt.s32.totalorder %s28, 3
      %p349 = pnand %p347, %p348
      %p350 = pneg %p349
      // Predicated region
      $region45: #{tpu_custom_call.1} parent=5 // pred_check
        _
      $region46: #{tpu_custom_call.1} parent=5 // pred_check_branch
        %352 = sbr.rel (%p349) target = $region48
      $region47: #{tpu_custom_call.1} parent=5 // pred_region
        %s353 = ssub.s32 %s28, 1
        %s354 = sand.u32 %s41, 1
        %s355 = scalar_lea.sflag [#allocation3], %s354
        %s356 = sand.u32 %s41, 1
        %s357 = smul.addr %s356, 8
        %s358 = scalar_lea.vmem [#allocation2], %s357
        // Predicated region
        $region49: #{tpu_custom_call.1} parent=47 // pred_check
          %p359 = pneg %p54
        $region50: #{tpu_custom_call.1} parent=47 // pred_check_branch
          %361 = sbr.rel (%p359) target = $region52
        $region51: #{tpu_custom_call.1} parent=47 // pred_region
          %362 = dma.done %s355, 128
        $region52: #{tpu_custom_call.1} parent=47 // pred_fallthru
          _
        %s363 = sand.u32 %s33, 1
        %s364 = scalar_lea.sflag [#allocation6], %s363
        %s365 = sand.u32 %s67, 1
        %s366 = smul.addr %s365, 8
        %s367 = scalar_lea.vmem [#allocation5], %s366
        // Predicated region
        $region53: #{tpu_custom_call.1} parent=47 // pred_check
          %p368 = pneg %p80
        $region54: #{tpu_custom_call.1} parent=47 // pred_check_branch
          %370 = sbr.rel (%p368) target = $region56
        $region55: #{tpu_custom_call.1} parent=47 // pred_region
          %371 = dma.done %s364, 128
        $region56: #{tpu_custom_call.1} parent=47 // pred_fallthru
          _
        %s372 = sand.u32 %s33, 1
        %s373 = scalar_lea.sflag [#allocation6], %s372
        %s374 = sand.u32 %s93, 1
        %s375 = smul.addr %s374, 8
        %s376 = scalar_lea.vmem [#allocation7], %s375
        // Predicated region
        $region57: #{tpu_custom_call.1} parent=47 // pred_check
          %p377 = pneg %p106
        $region58: #{tpu_custom_call.1} parent=47 // pred_check_branch
          %379 = sbr.rel (%p377) target = $region60
        $region59: #{tpu_custom_call.1} parent=47 // pred_region
          %380 = dma.done %s373, 128
        $region60: #{tpu_custom_call.1} parent=47 // pred_fallthru
          _
        // Predicated region
        $region61: #{tpu_custom_call.1} parent=47 // pred_check
          %p381 = pneg %p127
        $region62: #{tpu_custom_call.1} parent=47 // pred_check_branch
          %383 = sbr.rel (%p381) target = $region64
        $region63: #{tpu_custom_call.1} parent=47 // pred_region
          %384 = dma.done [#allocation9], 384
        $region64: #{tpu_custom_call.1} parent=47 // pred_fallthru
          _
        // Predicated region
        $region65: #{tpu_custom_call.1} parent=47 // pred_check
          %p385 = pneg %p148
        $region66: #{tpu_custom_call.1} parent=47 // pred_check_branch
          %387 = sbr.rel (%p385) target = $region68
        $region67: #{tpu_custom_call.1} parent=47 // pred_region
          %388 = dma.done [#allocation9], 48
        $region68: #{tpu_custom_call.1} parent=47 // pred_fallthru
          _
        %s389 = sand.u32 %s41, 1
        %s390 = scalar_lea.sflag [#allocation3], %s389
        %s391 = sand.u32 %s41, 1
        %s392 = smul.addr %s391, 8
        %s393 = scalar_lea.vmem [#allocation2], %s392
        %p394 = pneg %p54
        %p395 = pneg %p51
        %s396 = sand.u32 %s33, 1
        %s397 = scalar_lea.sflag [#allocation6], %s396
        %s398 = sand.u32 %s67, 1
        %s399 = smul.addr %s398, 8
        %s400 = scalar_lea.vmem [#allocation5], %s399
        %p401 = pneg %p80
        %p402 = pneg %p77
        %s403 = sand.u32 %s33, 1
        %s404 = scalar_lea.sflag [#allocation6], %s403
        %s405 = sand.u32 %s93, 1
        %s406 = smul.addr %s405, 8
        %s407 = scalar_lea.vmem [#allocation7], %s406
        %p408 = pneg %p106
        %p409 = pneg %p103
        %p410 = pneg %p127
        %p411 = pneg %p124
        %p412 = pneg %p148
        %p413 = pneg %p145
        %p414 = pneg %p169
        %p415 = pneg %p166
        %p416 = pneg %p190
        %p417 = pneg %p187
        %p418 = pneg %p216
        %p419 = pneg %p213
        %s420 = sand.u32 %s203, 1
        %s421 = scalar_lea.sflag [#allocation4], %s420
        %s422 = sand.u32 %s203, 1
        %s423 = smul.addr %s422, 8
        %s424 = scalar_lea.vmem [#allocation11], %s423
        %p425 = pneg %p242
        %p426 = pneg %p239
        %s427 = sand.u32 %s229, 1
        %s428 = scalar_lea.sflag [#allocation13], %s427
        %s429 = sand.u32 %s229, 1
        %s430 = smul.addr %s429, 8
        %s431 = scalar_lea.vmem [#allocation12], %s430
        %v433 = vld [vmem:[%s358] sm:$0xff]
        %v434 = vpack.c.bf16 %v433, %v433
        %v435 = vld [vmem:[#allocation8] sm:$0xf]
        %v436 = vld [vmem:[#allocation8 + $0x4] sm:$0xf]
        %v437 = vld [vmem:[#allocation10] sm:$0x1]
        %v439 = vlaneseq
        %v440 = vshrl.u32 %v439, 7
        %v441 = vsub.s32 0, %v440
        %v442 = vrot.slane %v437, %v441
        %v446 = vunpack.c.l.b16 %v435
        %v447 = vunpack.c.l.b16 %v436
        %v448 = vpack.c.b16 %v447, %v446
        %vm450 = vcmask 130048
        %v452 = vsel %vm450, %v434, 0
        %454 = vmatprep.subr.bf16.mxu0 0
        %455 = vmatpush1.bf16.msra.mxu0 %v448
        %456 = vmatprep.subr.bf16.mxu0 0
        %457 = vmatpush1.bf16.msra.mxu0 0
        %458 = vmatprep.subr.bf16.mxu0 0
        %459 = vmatpush1.bf16.msra.mxu0 0
        %460 = vmatprep.subr.bf16.mxu0 0
        %461 = vmatpush1.bf16.msra.mxu0 0
        %462 = vmatprep.subr.bf16.mxu0 0
        %463 = vmatpush1.bf16.msra.mxu0 0
        %464 = vmatprep.subr.bf16.mxu0 0
        %465 = vmatpush1.bf16.msra.mxu0 0
        %466 = vmatprep.subr.bf16.mxu0 0
        %467 = vmatpush1.bf16.msra.mxu0 0
        %468 = vmatprep.subr.bf16.mxu0 0
        %469 = vmatpush1.bf16.msra.mxu0 0
        %470 = vmatprep.subr.bf16.mxu0 0
        %471 = vmatpush1.bf16.msra.mxu0 0
        %472 = vmatprep.subr.bf16.mxu0 0
        %473 = vmatpush1.bf16.msra.mxu0 0
        %474 = vmatprep.subr.bf16.mxu0 0
        %475 = vmatpush1.bf16.msra.mxu0 0
        %476 = vmatprep.subr.bf16.mxu0 0
        %477 = vmatpush1.bf16.msra.mxu0 0
        %478 = vmatprep.subr.bf16.mxu0 0
        %479 = vmatpush1.bf16.msra.mxu0 0
        %480 = vmatprep.subr.bf16.mxu0 0
        %481 = vmatpush1.bf16.msra.mxu0 0
        %482 = vmatprep.subr.bf16.mxu0 0
        %483 = vmatpush1.bf16.msra.mxu0 0
        %484 = vmatprep.subr.bf16.mxu0 0
        %485 = vmatpush1.bf16.msra.mxu0 0
        %486 = vmatprep.mubr.bf16.mxu0 0
        %487 = vmatmul.mubr.bf16.gmra.mrb[0].mxu0 %v452
        %v488 = vpop.f32.mrb[0].mxu0
        %v489 = vadd.f32 %v442, %v488
        %v490 = vpop.f32.mrb[0].mxu0
        %v491 = vpop.f32.mrb[0].mxu0
        %v492 = vpop.f32.mrb[0].mxu0
        %493 = vdwg.mxu0
        %v494 = vld [vmem:[%s367] sm:$0xff]
        %v495 = vpack.c.bf16 %v494, %v494
        %s496 = scalar_lea.vmem [#allocation8], 8
        %v497 = vld [vmem:[%s496] sm:$0xf]
        %v498 = vld [vmem:[%s496 + $0x4] sm:$0xf]
        %s499 = scalar_lea.vmem [#allocation10], 1
        %v500 = vld [vmem:[%s499] sm:$0x1]
        %v502 = vlaneseq
        %v503 = vshrl.u32 %v502, 7
        %v504 = vsub.s32 0, %v503
        %v505 = vrot.slane %v500, %v504
        %v509 = vunpack.c.l.b16 %v497
        %v510 = vunpack.c.l.b16 %v498
        %v511 = vpack.c.b16 %v510, %v509
        %v514 = vsel %vm450, %v495, 0
        %516 = vmatprep.subr.bf16.mxu0 0
        %517 = vmatpush1.bf16.msra.mxu0 %v511
        %518 = vmatprep.subr.bf16.mxu0 0
        %519 = vmatpush1.bf16.msra.mxu0 0
        %520 = vmatprep.subr.bf16.mxu0 0
        %521 = vmatpush1.bf16.msra.mxu0 0
        %522 = vmatprep.subr.bf16.mxu0 0
        %523 = vmatpush1.bf16.msra.mxu0 0
        %524 = vmatprep.subr.bf16.mxu0 0
        %525 = vmatpush1.bf16.msra.mxu0 0
        %526 = vmatprep.subr.bf16.mxu0 0
        %527 = vmatpush1.bf16.msra.mxu0 0
        %528 = vmatprep.subr.bf16.mxu0 0
        %529 = vmatpush1.bf16.msra.mxu0 0
        %530 = vmatprep.subr.bf16.mxu0 0
        %531 = vmatpush1.bf16.msra.mxu0 0
        %532 = vmatprep.subr.bf16.mxu0 0
        %533 = vmatpush1.bf16.msra.mxu0 0
        %534 = vmatprep.subr.bf16.mxu0 0
        %535 = vmatpush1.bf16.msra.mxu0 0
        %536 = vmatprep.subr.bf16.mxu0 0
        %537 = vmatpush1.bf16.msra.mxu0 0
        %538 = vmatprep.subr.bf16.mxu0 0
        %539 = vmatpush1.bf16.msra.mxu0 0
        %540 = vmatprep.subr.bf16.mxu0 0
        %541 = vmatpush1.bf16.msra.mxu0 0
        %542 = vmatprep.subr.bf16.mxu0 0
        %543 = vmatpush1.bf16.msra.mxu0 0
        %544 = vmatprep.subr.bf16.mxu0 0
        %545 = vmatpush1.bf16.msra.mxu0 0
        %546 = vmatprep.subr.bf16.mxu0 0
        %547 = vmatpush1.bf16.msra.mxu0 0
        %548 = vmatprep.mubr.bf16.mxu0 0
        %549 = vmatmul.mubr.bf16.gmra.mrb[0].mxu0 %v514
        %v550 = vpop.f32.mrb[0].mxu0
        %v551 = vadd.f32 %v505, %v550
        %v552 = vpop.f32.mrb[0].mxu0
        %v553 = vpop.f32.mrb[0].mxu0
        %v554 = vpop.f32.mrb[0].mxu0
        %555 = vdwg.mxu0
        %v556 = vld [vmem:[%s376] sm:$0xff]
        %v557 = vpack.c.bf16 %v556, %v556
        %s558 = scalar_lea.vmem [#allocation8], 16
        %v559 = vld [vmem:[%s558] sm:$0xf]
        %v560 = vld [vmem:[%s558 + $0x4] sm:$0xf]
        %s561 = scalar_lea.vmem [#allocation10], 2
        %v562 = vld [vmem:[%s561] sm:$0x1]
        %v564 = vlaneseq
        %v565 = vshrl.u32 %v564, 7
        %v566 = vsub.s32 0, %v565
        %v567 = vrot.slane %v562, %v566
        %v571 = vunpack.c.l.b16 %v559
        %v572 = vunpack.c.l.b16 %v560
        %v573 = vpack.c.b16 %v572, %v571
        %v576 = vsel %vm450, %v557, 0
        %578 = vmatprep.subr.bf16.mxu0 0
        %579 = vmatpush1.bf16.msra.mxu0 %v573
        %580 = vmatprep.subr.bf16.mxu0 0
        %581 = vmatpush1.bf16.msra.mxu0 0
        %582 = vmatprep.subr.bf16.mxu0 0
        %583 = vmatpush1.bf16.msra.mxu0 0
        %584 = vmatprep.subr.bf16.mxu0 0
        %585 = vmatpush1.bf16.msra.mxu0 0
        %586 = vmatprep.subr.bf16.mxu0 0
        %587 = vmatpush1.bf16.msra.mxu0 0
        %588 = vmatprep.subr.bf16.mxu0 0
        %589 = vmatpush1.bf16.msra.mxu0 0
        %590 = vmatprep.subr.bf16.mxu0 0
        %591 = vmatpush1.bf16.msra.mxu0 0
        %592 = vmatprep.subr.bf16.mxu0 0
        %593 = vmatpush1.bf16.msra.mxu0 0
        %594 = vmatprep.subr.bf16.mxu0 0
        %595 = vmatpush1.bf16.msra.mxu0 0
        %596 = vmatprep.subr.bf16.mxu0 0
        %597 = vmatpush1.bf16.msra.mxu0 0
        %598 = vmatprep.subr.bf16.mxu0 0
        %599 = vmatpush1.bf16.msra.mxu0 0
        %600 = vmatprep.subr.bf16.mxu0 0
        %601 = vmatpush1.bf16.msra.mxu0 0
        %602 = vmatprep.subr.bf16.mxu0 0
        %603 = vmatpush1.bf16.msra.mxu0 0
        %604 = vmatprep.subr.bf16.mxu0 0
        %605 = vmatpush1.bf16.msra.mxu0 0
        %606 = vmatprep.subr.bf16.mxu0 0
        %607 = vmatpush1.bf16.msra.mxu0 0
        %608 = vmatprep.subr.bf16.mxu0 0
        %609 = vmatpush1.bf16.msra.mxu0 0
        %610 = vmatprep.mubr.bf16.mxu0 0
        %611 = vmatmul.mubr.bf16.gmra.mrb[0].mxu0 %v576
        %v612 = vpop.f32.mrb[0].mxu0
        %v613 = vadd.f32 %v567, %v612
        %v614 = vpop.f32.mrb[0].mxu0
        %v615 = vpop.f32.mrb[0].mxu0
        %v616 = vpop.f32.mrb[0].mxu0
        %617 = vdwg.mxu0
        %v618 = vld [vmem:[%s5] sm:$0xf]
        %v619 = vld [vmem:[%s5 + $0x4] sm:$0xf]
        %v620 = vld [vmem:[%s5 + $0x8] sm:$0xf]
        %v621 = vld [vmem:[%s5 + $0xc] sm:$0xf]
        %v622 = vpack.c.bf16 %v489, %v489
        %v623 = vpack.c.bf16 %v551, %v551
        %v624 = vpack.c.bf16 %v613, %v613
        %vm625 = vcmask 64512
        %v627 = vsel %vm625, %v622, 0
        %v630 = vsel %vm625, %v623, 0
        %632 = vmatprep.subr.bf16.mxu0 0
        %633 = vmatpush1.bf16.xpose.msra.mxu0 %v630
        %634 = vmatprep.subr.bf16.mxu0 0
        %635 = vmatpush1.bf16.xpose.msra.mxu0 0
        %636 = vmatprep.subr.bf16.mxu0 0
        %637 = vmatpush1.bf16.xpose.msra.mxu0 0
        %638 = vmatprep.subr.bf16.mxu0 0
        %639 = vmatpush1.bf16.xpose.msra.mxu0 0
        %640 = vmatprep.subr.bf16.mxu0 0
        %641 = vmatpush1.bf16.xpose.msra.mxu0 0
        %642 = vmatprep.subr.bf16.mxu0 0
        %643 = vmatpush1.bf16.xpose.msra.mxu0 0
        %644 = vmatprep.subr.bf16.mxu0 0
        %645 = vmatpush1.bf16.xpose.msra.mxu0 0
        %646 = vmatprep.subr.bf16.mxu0 0
        %647 = vmatpush1.bf16.xpose.msra.mxu0 0
        %648 = vmatprep.subr.bf16.mxu0 0
        %649 = vmatpush1.bf16.xpose.msra.mxu0 0
        %650 = vmatprep.subr.bf16.mxu0 0
        %651 = vmatpush1.bf16.xpose.msra.mxu0 0
        %652 = vmatprep.subr.bf16.mxu0 0
        %653 = vmatpush1.bf16.xpose.msra.mxu0 0
        %654 = vmatprep.subr.bf16.mxu0 0
        %655 = vmatpush1.bf16.xpose.msra.mxu0 0
        %656 = vmatprep.subr.bf16.mxu0 0
        %657 = vmatpush1.bf16.xpose.msra.mxu0 0
        %658 = vmatprep.subr.bf16.mxu0 0
        %659 = vmatpush1.bf16.xpose.msra.mxu0 0
        %660 = vmatprep.subr.bf16.mxu0 0
        %661 = vmatpush1.bf16.xpose.msra.mxu0 0
        %662 = vmatprep.subr.bf16.mxu0 0
        %663 = vmatpush1.bf16.xpose.msra.mxu0 0
        %664 = vmatprep.mubr.bf16.mxu0 0
        %665 = vmatmul.mubr.bf16.gmra.mrb[0].mxu0 %v627
        %v666 = vpop.f32.mrb[0].mxu0
        %v667 = vadd.f32 0.0, %v666
        %v668 = vpop.f32.mrb[0].mxu0
        %v669 = vpop.f32.mrb[0].mxu0
        %v670 = vpop.f32.mrb[0].mxu0
        %671 = vdwg.mxu0
        %v672 = vsel %vm625, %v667, -inf
        %673 = vmax.xlane.f32.xlu0 %v672
        %v674 = vpop.xlane.xlu0 %673
        %v675 = vsub.f32 %v667, %v674
        %v676 = vmul.f32 %v675, 1.442695
        %v677 = vpow.pop %v676
        %v678 = vsel %vm625, %v677, 0.0
        %679 = vadd.xlane.f32.xlu0 %v678
        %v680 = vpop.xlane.xlu0 %679
        %v681 = vrcp.pop %v680
        %v682 = vmul.f32 %v677, %v681
        %683 = vst.msk [vmem:[%s431] sm:$0xff] %vm625, %v682
        %v684 = vpack.c.bf16 %v682, %v682
        %v686 = vsel %vm625, %v684, 0
        %vm688 = vcmask 1043456
        %v690 = vsel %vm688, %v624, 0
        %692 = vmatprep.subr.bf16.mxu0 0
        %693 = vmatpush1.bf16.msra.mxu0 %v690
        %694 = vmatprep.subr.bf16.mxu0 0
        %695 = vmatpush1.bf16.msra.mxu0 0
        %696 = vmatprep.subr.bf16.mxu0 0
        %697 = vmatpush1.bf16.msra.mxu0 0
        %698 = vmatprep.subr.bf16.mxu0 0
        %699 = vmatpush1.bf16.msra.mxu0 0
        %700 = vmatprep.subr.bf16.mxu0 0
        %701 = vmatpush1.bf16.msra.mxu0 0
        %702 = vmatprep.subr.bf16.mxu0 0
        %703 = vmatpush1.bf16.msra.mxu0 0
        %704 = vmatprep.subr.bf16.mxu0 0
        %705 = vmatpush1.bf16.msra.mxu0 0
        %706 = vmatprep.subr.bf16.mxu0 0
        %707 = vmatpush1.bf16.msra.mxu0 0
        %708 = vmatprep.subr.bf16.mxu0 0
        %709 = vmatpush1.bf16.msra.mxu0 0
        %710 = vmatprep.subr.bf16.mxu0 0
        %711 = vmatpush1.bf16.msra.mxu0 0
        %712 = vmatprep.subr.bf16.mxu0 0
        %713 = vmatpush1.bf16.msra.mxu0 0
        %714 = vmatprep.subr.bf16.mxu0 0
        %715 = vmatpush1.bf16.msra.mxu0 0
        %716 = vmatprep.subr.bf16.mxu0 0
        %717 = vmatpush1.bf16.msra.mxu0 0
        %718 = vmatprep.subr.bf16.mxu0 0
        %719 = vmatpush1.bf16.msra.mxu0 0
        %720 = vmatprep.subr.bf16.mxu0 0
        %721 = vmatpush1.bf16.msra.mxu0 0
        %722 = vmatprep.subr.bf16.mxu0 0
        %723 = vmatpush1.bf16.msra.mxu0 0
        %724 = vmatprep.mubr.bf16.mxu0 0
        %725 = vmatmul.mubr.bf16.gmra.mrb[0].mxu0 %v686
        %v726 = vpop.f32.mrb[0].mxu0
        %v727 = vadd.f32 0.0, %v726
        %v728 = vpop.f32.mrb[0].mxu0
        %v729 = vpop.f32.mrb[0].mxu0
        %v730 = vpop.f32.mrb[0].mxu0
        %731 = vdwg.mxu0
        %v732 = vpack.c.bf16 %v727, %v727
        %734 = vrot.lane.b32.xlu0 %v622, 120
        %v735 = vpop.permute.xlu0 %734
        %737 = vrot.lane.b32.xlu0 %v623, 120
        %v738 = vpop.permute.xlu0 %737
        %v740 = vsel %vm625, %v735, 0
        %v743 = vsel %vm625, %v738, 0
        %745 = vmatprep.subr.bf16.mxu0 0
        %746 = vmatpush1.bf16.xpose.msra.mxu0 %v743
        %747 = vmatprep.subr.bf16.mxu0 0
        %748 = vmatpush1.bf16.xpose.msra.mxu0 0
        %749 = vmatprep.subr.bf16.mxu0 0
        %750 = vmatpush1.bf16.xpose.msra.mxu0 0
        %751 = vmatprep.subr.bf16.mxu0 0
        %752 = vmatpush1.bf16.xpose.msra.mxu0 0
        %753 = vmatprep.subr.bf16.mxu0 0
        %754 = vmatpush1.bf16.xpose.msra.mxu0 0
        %755 = vmatprep.subr.bf16.mxu0 0
        %756 = vmatpush1.bf16.xpose.msra.mxu0 0
        %757 = vmatprep.subr.bf16.mxu0 0
        %758 = vmatpush1.bf16.xpose.msra.mxu0 0
        %759 = vmatprep.subr.bf16.mxu0 0
        %760 = vmatpush1.bf16.xpose.msra.mxu0 0
        %761 = vmatprep.subr.bf16.mxu0 0
        %762 = vmatpush1.bf16.xpose.msra.mxu0 0
        %763 = vmatprep.subr.bf16.mxu0 0
        %764 = vmatpush1.bf16.xpose.msra.mxu0 0
        %765 = vmatprep.subr.bf16.mxu0 0
        %766 = vmatpush1.bf16.xpose.msra.mxu0 0
        %767 = vmatprep.subr.bf16.mxu0 0
        %768 = vmatpush1.bf16.xpose.msra.mxu0 0
        %769 = vmatprep.subr.bf16.mxu0 0
        %770 = vmatpush1.bf16.xpose.msra.mxu0 0
        %771 = vmatprep.subr.bf16.mxu0 0
        %772 = vmatpush1.bf16.xpose.msra.mxu0 0
        %773 = vmatprep.subr.bf16.mxu0 0
        %774 = vmatpush1.bf16.xpose.msra.mxu0 0
        %775 = vmatprep.subr.bf16.mxu0 0
        %776 = vmatpush1.bf16.xpose.msra.mxu0 0
        %777 = vmatprep.mubr.bf16.mxu0 0
        %778 = vmatmul.mubr.bf16.gmra.mrb[0].mxu0 %v740
        %v779 = vpop.f32.mrb[0].mxu0
        %v780 = vadd.f32 0.0, %v779
        %v781 = vpop.f32.mrb[0].mxu0
        %v782 = vpop.f32.mrb[0].mxu0
        %v783 = vpop.f32.mrb[0].mxu0
        %784 = vdwg.mxu0
        %v785 = vsel %vm625, %v780, -inf
        %786 = vmax.xlane.f32.xlu0 %v785
        %v787 = vpop.xlane.xlu0 %786
        %v788 = vsub.f32 %v780, %v787
        %v789 = vmul.f32 %v788, 1.442695
        %v790 = vpow.pop %v789
        %v791 = vsel %vm625, %v790, 0.0
        %792 = vadd.xlane.f32.xlu0 %v791
        %v793 = vpop.xlane.xlu0 %792
        %v794 = vrcp.pop %v793
        %v795 = vmul.f32 %v790, %v794
        %797 = vrot.lane.b32.xlu0 %v795, 8
        %v798 = vpop.permute.xlu0 %797
        %vm800 = vcmask 130112
        %801 = vst.msk [vmem:[%s431] sm:$0xff] %vm800, %v798
        %v802 = vpack.c.bf16 %v795, %v795
        %804 = vrot.lane.b32.xlu0 %v624, 120
        %v805 = vpop.permute.xlu0 %804
        %v807 = vsel %vm625, %v802, 0
        %v810 = vsel %vm688, %v805, 0
        %812 = vmatprep.subr.bf16.mxu0 0
        %813 = vmatpush1.bf16.msra.mxu0 %v810
        %814 = vmatprep.subr.bf16.mxu0 0
        %815 = vmatpush1.bf16.msra.mxu0 0
        %816 = vmatprep.subr.bf16.mxu0 0
        %817 = vmatpush1.bf16.msra.mxu0 0
        %818 = vmatprep.subr.bf16.mxu0 0
        %819 = vmatpush1.bf16.msra.mxu0 0
        %820 = vmatprep.subr.bf16.mxu0 0
        %821 = vmatpush1.bf16.msra.mxu0 0
        %822 = vmatprep.subr.bf16.mxu0 0
        %823 = vmatpush1.bf16.msra.mxu0 0
        %824 = vmatprep.subr.bf16.mxu0 0
        %825 = vmatpush1.bf16.msra.mxu0 0
        %826 = vmatprep.subr.bf16.mxu0 0
        %827 = vmatpush1.bf16.msra.mxu0 0
        %828 = vmatprep.subr.bf16.mxu0 0
        %829 = vmatpush1.bf16.msra.mxu0 0
        %830 = vmatprep.subr.bf16.mxu0 0
        %831 = vmatpush1.bf16.msra.mxu0 0
        %832 = vmatprep.subr.bf16.mxu0 0
        %833 = vmatpush1.bf16.msra.mxu0 0
        %834 = vmatprep.subr.bf16.mxu0 0
        %835 = vmatpush1.bf16.msra.mxu0 0
        %836 = vmatprep.subr.bf16.mxu0 0
        %837 = vmatpush1.bf16.msra.mxu0 0
        %838 = vmatprep.subr.bf16.mxu0 0
        %839 = vmatpush1.bf16.msra.mxu0 0
        %840 = vmatprep.subr.bf16.mxu0 0
        %841 = vmatpush1.bf16.msra.mxu0 0
        %842 = vmatprep.subr.bf16.mxu0 0
        %843 = vmatpush1.bf16.msra.mxu0 0
        %844 = vmatprep.mubr.bf16.mxu0 0
        %845 = vmatmul.mubr.bf16.gmra.mrb[0].mxu0 %v807
        %v846 = vpop.f32.mrb[0].mxu0
        %v847 = vadd.f32 0.0, %v846
        %v848 = vpop.f32.mrb[0].mxu0
        %v849 = vpop.f32.mrb[0].mxu0
        %v850 = vpop.f32.mrb[0].mxu0
        %851 = vdwg.mxu0
        %v852 = vpack.c.bf16 %v847, %v847
        %v854 = vsel %vm625, %v852, 0
        %v857 = vsel %vm688, %v619, 0
        %859 = vmatprep.subr.bf16.mxu0 0
        %860 = vmatpush1.bf16.msra.mxu0 %v857
        %861 = vmatprep.subr.bf16.mxu0 0
        %862 = vmatpush1.bf16.msra.mxu0 0
        %863 = vmatprep.subr.bf16.mxu0 0
        %864 = vmatpush1.bf16.msra.mxu0 0
        %865 = vmatprep.subr.bf16.mxu0 0
        %866 = vmatpush1.bf16.msra.mxu0 0
        %867 = vmatprep.subr.bf16.mxu0 0
        %868 = vmatpush1.bf16.msra.mxu0 0
        %869 = vmatprep.subr.bf16.mxu0 0
        %870 = vmatpush1.bf16.msra.mxu0 0
        %871 = vmatprep.subr.bf16.mxu0 0
        %872 = vmatpush1.bf16.msra.mxu0 0
        %873 = vmatprep.subr.bf16.mxu0 0
        %874 = vmatpush1.bf16.msra.mxu0 0
        %875 = vmatprep.subr.bf16.mxu0 0
        %876 = vmatpush1.bf16.msra.mxu0 0
        %877 = vmatprep.subr.bf16.mxu0 0
        %878 = vmatpush1.bf16.msra.mxu0 0
        %879 = vmatprep.subr.bf16.mxu0 0
        %880 = vmatpush1.bf16.msra.mxu0 0
        %881 = vmatprep.subr.bf16.mxu0 0
        %882 = vmatpush1.bf16.msra.mxu0 0
        %883 = vmatprep.subr.bf16.mxu0 0
        %884 = vmatpush1.bf16.msra.mxu0 0
        %885 = vmatprep.subr.bf16.mxu0 0
        %886 = vmatpush1.bf16.msra.mxu0 0
        %887 = vmatprep.subr.bf16.mxu0 0
        %888 = vmatpush1.bf16.msra.mxu0 0
        %889 = vmatprep.subr.bf16.mxu0 0
        %890 = vmatpush1.bf16.msra.mxu0 0
        %891 = vmatprep.mubr.bf16.mxu0 0
        %892 = vmatmul.mubr.bf16.gmra.mrb[0].mxu0 %v854
        %v893 = vpop.f32.mrb[0].mxu0
        %v894 = vadd.f32 0.0, %v893
        %v895 = vpop.f32.mrb[0].mxu0
        %v896 = vpop.f32.mrb[0].mxu0
        %v897 = vpop.f32.mrb[0].mxu0
        %898 = vdwg.mxu0
        %v900 = vsel %vm625, %v732, 0
        %v903 = vsel %vm688, %v618, 0
        %905 = vmatprep.subr.bf16.mxu0 0
        %906 = vmatpush1.bf16.msra.mxu0 %v903
        %907 = vmatprep.subr.bf16.mxu0 0
        %908 = vmatpush1.bf16.msra.mxu0 0
        %909 = vmatprep.subr.bf16.mxu0 0
        %910 = vmatpush1.bf16.msra.mxu0 0
        %911 = vmatprep.subr.bf16.mxu0 0
        %912 = vmatpush1.bf16.msra.mxu0 0
        %913 = vmatprep.subr.bf16.mxu0 0
        %914 = vmatpush1.bf16.msra.mxu0 0
        %915 = vmatprep.subr.bf16.mxu0 0
        %916 = vmatpush1.bf16.msra.mxu0 0
        %917 = vmatprep.subr.bf16.mxu0 0
        %918 = vmatpush1.bf16.msra.mxu0 0
        %919 = vmatprep.subr.bf16.mxu0 0
        %920 = vmatpush1.bf16.msra.mxu0 0
        %921 = vmatprep.subr.bf16.mxu0 0
        %922 = vmatpush1.bf16.msra.mxu0 0
        %923 = vmatprep.subr.bf16.mxu0 0
        %924 = vmatpush1.bf16.msra.mxu0 0
        %925 = vmatprep.subr.bf16.mxu0 0
        %926 = vmatpush1.bf16.msra.mxu0 0
        %927 = vmatprep.subr.bf16.mxu0 0
        %928 = vmatpush1.bf16.msra.mxu0 0
        %929 = vmatprep.subr.bf16.mxu0 0
        %930 = vmatpush1.bf16.msra.mxu0 0
        %931 = vmatprep.subr.bf16.mxu0 0
        %932 = vmatpush1.bf16.msra.mxu0 0
        %933 = vmatprep.subr.bf16.mxu0 0
        %934 = vmatpush1.bf16.msra.mxu0 0
        %935 = vmatprep.subr.bf16.mxu0 0
        %936 = vmatpush1.bf16.msra.mxu0 0
        %937 = vmatprep.mubr.bf16.mxu0 0
        %938 = vmatmul.mubr.bf16.gmra.mrb[0].mxu0 %v900
        %v939 = vpop.f32.mrb[0].mxu0
        %v940 = vadd.f32 %v894, %v939
        %v941 = vpop.f32.mrb[0].mxu0
        %v942 = vpop.f32.mrb[0].mxu0
        %v943 = vpop.f32.mrb[0].mxu0
        %944 = vdwg.mxu0
        %945 = vrot.lane.b32.xlu0 %v622, 112
        %v946 = vpop.permute.xlu0 %945
        %947 = vrot.lane.b32.xlu0 %v623, 112
        %v948 = vpop.permute.xlu0 %947
        %v950 = vsel %vm625, %v946, 0
        %v953 = vsel %vm625, %v948, 0
        %955 = vmatprep.subr.bf16.mxu0 0
        %956 = vmatpush1.bf16.xpose.msra.mxu0 %v953
        %957 = vmatprep.subr.bf16.mxu0 0
        %958 = vmatpush1.bf16.xpose.msra.mxu0 0
        %959 = vmatprep.subr.bf16.mxu0 0
        %960 = vmatpush1.bf16.xpose.msra.mxu0 0
        %961 = vmatprep.subr.bf16.mxu0 0
        %962 = vmatpush1.bf16.xpose.msra.mxu0 0
        %963 = vmatprep.subr.bf16.mxu0 0
        %964 = vmatpush1.bf16.xpose.msra.mxu0 0
        %965 = vmatprep.subr.bf16.mxu0 0
        %966 = vmatpush1.bf16.xpose.msra.mxu0 0
        %967 = vmatprep.subr.bf16.mxu0 0
        %968 = vmatpush1.bf16.xpose.msra.mxu0 0
        %969 = vmatprep.subr.bf16.mxu0 0
        %970 = vmatpush1.bf16.xpose.msra.mxu0 0
        %971 = vmatprep.subr.bf16.mxu0 0
        %972 = vmatpush1.bf16.xpose.msra.mxu0 0
        %973 = vmatprep.subr.bf16.mxu0 0
        %974 = vmatpush1.bf16.xpose.msra.mxu0 0
        %975 = vmatprep.subr.bf16.mxu0 0
        %976 = vmatpush1.bf16.xpose.msra.mxu0 0
        %977 = vmatprep.subr.bf16.mxu0 0
        %978 = vmatpush1.bf16.xpose.msra.mxu0 0
        %979 = vmatprep.subr.bf16.mxu0 0
        %980 = vmatpush1.bf16.xpose.msra.mxu0 0
        %981 = vmatprep.subr.bf16.mxu0 0
        %982 = vmatpush1.bf16.xpose.msra.mxu0 0
        %983 = vmatprep.subr.bf16.mxu0 0
        %984 = vmatpush1.bf16.xpose.msra.mxu0 0
        %985 = vmatprep.subr.bf16.mxu0 0
        %986 = vmatpush1.bf16.xpose.msra.mxu0 0
        %987 = vmatprep.mubr.bf16.mxu0 0
        %988 = vmatmul.mubr.bf16.gmra.mrb[0].mxu0 %v950
        %v989 = vpop.f32.mrb[0].mxu0
        %v990 = vadd.f32 0.0, %v989
        %v991 = vpop.f32.mrb[0].mxu0
        %v992 = vpop.f32.mrb[0].mxu0
        %v993 = vpop.f32.mrb[0].mxu0
        %994 = vdwg.mxu0
        %v995 = vsel %vm625, %v990, -inf
        %996 = vmax.xlane.f32.xlu0 %v995
        %v997 = vpop.xlane.xlu0 %996
        %v998 = vsub.f32 %v990, %v997
        %v999 = vmul.f32 %v998, 1.442695
        %v1000 = vpow.pop %v999
        %v1001 = vsel %vm625, %v1000, 0.0
        %1002 = vadd.xlane.f32.xlu0 %v1001
        %v1003 = vpop.xlane.xlu0 %1002
        %v1004 = vrcp.pop %v1003
        %v1005 = vmul.f32 %v1000, %v1004
        %1007 = vrot.lane.b32.xlu0 %v1005, 16
        %v1008 = vpop.permute.xlu0 %1007
        %vm1010 = vcmask 195712
        %1011 = vst.msk [vmem:[%s431] sm:$0xff] %vm1010, %v1008
        %v1012 = vpack.c.bf16 %v1005, %v1005
        %1013 = vrot.lane.b32.xlu0 %v624, 112
        %v1014 = vpop.permute.xlu0 %1013
        %v1016 = vsel %vm625, %v1012, 0
        %v1019 = vsel %vm688, %v1014, 0
        %1021 = vmatprep.subr.bf16.mxu0 0
        %1022 = vmatpush1.bf16.msra.mxu0 %v1019
        %1023 = vmatprep.subr.bf16.mxu0 0
        %1024 = vmatpush1.bf16.msra.mxu0 0
        %1025 = vmatprep.subr.bf16.mxu0 0
        %1026 = vmatpush1.bf16.msra.mxu0 0
        %1027 = vmatprep.subr.bf16.mxu0 0
        %1028 = vmatpush1.bf16.msra.mxu0 0
        %1029 = vmatprep.subr.bf16.mxu0 0
        %1030 = vmatpush1.bf16.msra.mxu0 0
        %1031 = vmatprep.subr.bf16.mxu0 0
        %1032 = vmatpush1.bf16.msra.mxu0 0
        %1033 = vmatprep.subr.bf16.mxu0 0
        %1034 = vmatpush1.bf16.msra.mxu0 0
        %1035 = vmatprep.subr.bf16.mxu0 0
        %1036 = vmatpush1.bf16.msra.mxu0 0
        %1037 = vmatprep.subr.bf16.mxu0 0
        %1038 = vmatpush1.bf16.msra.mxu0 0
        %1039 = vmatprep.subr.bf16.mxu0 0
        %1040 = vmatpush1.bf16.msra.mxu0 0
        %1041 = vmatprep.subr.bf16.mxu0 0
        %1042 = vmatpush1.bf16.msra.mxu0 0
        %1043 = vmatprep.subr.bf16.mxu0 0
        %1044 = vmatpush1.bf16.msra.mxu0 0
        %1045 = vmatprep.subr.bf16.mxu0 0
        %1046 = vmatpush1.bf16.msra.mxu0 0
        %1047 = vmatprep.subr.bf16.mxu0 0
        %1048 = vmatpush1.bf16.msra.mxu0 0
        %1049 = vmatprep.subr.bf16.mxu0 0
        %1050 = vmatpush1.bf16.msra.mxu0 0
        %1051 = vmatprep.subr.bf16.mxu0 0
        %1052 = vmatpush1.bf16.msra.mxu0 0
        %1053 = vmatprep.mubr.bf16.mxu0 0
        %1054 = vmatmul.mubr.bf16.gmra.mrb[0].mxu0 %v1016
        %v1055 = vpop.f32.mrb[0].mxu0
        %v1056 = vadd.f32 0.0, %v1055
        %v1057 = vpop.f32.mrb[0].mxu0
        %v1058 = vpop.f32.mrb[0].mxu0
        %v1059 = vpop.f32.mrb[0].mxu0
        %1060 = vdwg.mxu0
        %v1061 = vpack.c.bf16 %v1056, %v1056
        %v1063 = vsel %vm625, %v1061, 0
        %v1066 = vsel %vm688, %v620, 0
        %1068 = vmatprep.subr.bf16.mxu0 0
        %1069 = vmatpush1.bf16.msra.mxu0 %v1066
        %1070 = vmatprep.subr.bf16.mxu0 0
        %1071 = vmatpush1.bf16.msra.mxu0 0
        %1072 = vmatprep.subr.bf16.mxu0 0
        %1073 = vmatpush1.bf16.msra.mxu0 0
        %1074 = vmatprep.subr.bf16.mxu0 0
        %1075 = vmatpush1.bf16.msra.mxu0 0
        %1076 = vmatprep.subr.bf16.mxu0 0
        %1077 = vmatpush1.bf16.msra.mxu0 0
        %1078 = vmatprep.subr.bf16.mxu0 0
        %1079 = vmatpush1.bf16.msra.mxu0 0
        %1080 = vmatprep.subr.bf16.mxu0 0
        %1081 = vmatpush1.bf16.msra.mxu0 0
        %1082 = vmatprep.subr.bf16.mxu0 0
        %1083 = vmatpush1.bf16.msra.mxu0 0
        %1084 = vmatprep.subr.bf16.mxu0 0
        %1085 = vmatpush1.bf16.msra.mxu0 0
        %1086 = vmatprep.subr.bf16.mxu0 0
        %1087 = vmatpush1.bf16.msra.mxu0 0
        %1088 = vmatprep.subr.bf16.mxu0 0
        %1089 = vmatpush1.bf16.msra.mxu0 0
        %1090 = vmatprep.subr.bf16.mxu0 0
        %1091 = vmatpush1.bf16.msra.mxu0 0
        %1092 = vmatprep.subr.bf16.mxu0 0
        %1093 = vmatpush1.bf16.msra.mxu0 0
        %1094 = vmatprep.subr.bf16.mxu0 0
        %1095 = vmatpush1.bf16.msra.mxu0 0
        %1096 = vmatprep.subr.bf16.mxu0 0
        %1097 = vmatpush1.bf16.msra.mxu0 0
        %1098 = vmatprep.subr.bf16.mxu0 0
        %1099 = vmatpush1.bf16.msra.mxu0 0
        %1100 = vmatprep.mubr.bf16.mxu0 0
        %1101 = vmatmul.mubr.bf16.gmra.mrb[0].mxu0 %v1063
        %v1102 = vpop.f32.mrb[0].mxu0
        %v1103 = vadd.f32 0.0, %v1102
        %v1104 = vpop.f32.mrb[0].mxu0
        %v1105 = vpop.f32.mrb[0].mxu0
        %v1106 = vpop.f32.mrb[0].mxu0
        %1107 = vdwg.mxu0
        %v1108 = vadd.f32 %v940, %v1103
        %1109 = vrot.lane.b32.xlu0 %v622, 104
        %v1110 = vpop.permute.xlu0 %1109
        %1111 = vrot.lane.b32.xlu0 %v623, 104
        %v1112 = vpop.permute.xlu0 %1111
        %v1114 = vsel %vm625, %v1110, 0
        %v1117 = vsel %vm625, %v1112, 0
        %1119 = vmatprep.subr.bf16.mxu0 0
        %1120 = vmatpush1.bf16.xpose.msra.mxu0 %v1117
        %1121 = vmatprep.subr.bf16.mxu0 0
        %1122 = vmatpush1.bf16.xpose.msra.mxu0 0
        %1123 = vmatprep.subr.bf16.mxu0 0
        %1124 = vmatpush1.bf16.xpose.msra.mxu0 0
        %1125 = vmatprep.subr.bf16.mxu0 0
        %1126 = vmatpush1.bf16.xpose.msra.mxu0 0
        %1127 = vmatprep.subr.bf16.mxu0 0
        %1128 = vmatpush1.bf16.xpose.msra.mxu0 0
        %1129 = vmatprep.subr.bf16.mxu0 0
        %1130 = vmatpush1.bf16.xpose.msra.mxu0 0
        %1131 = vmatprep.subr.bf16.mxu0 0
        %1132 = vmatpush1.bf16.xpose.msra.mxu0 0
        %1133 = vmatprep.subr.bf16.mxu0 0
        %1134 = vmatpush1.bf16.xpose.msra.mxu0 0
        %1135 = vmatprep.subr.bf16.mxu0 0
        %1136 = vmatpush1.bf16.xpose.msra.mxu0 0
        %1137 = vmatprep.subr.bf16.mxu0 0
        %1138 = vmatpush1.bf16.xpose.msra.mxu0 0
        %1139 = vmatprep.subr.bf16.mxu0 0
        %1140 = vmatpush1.bf16.xpose.msra.mxu0 0
        %1141 = vmatprep.subr.bf16.mxu0 0
        %1142 = vmatpush1.bf16.xpose.msra.mxu0 0
        %1143 = vmatprep.subr.bf16.mxu0 0
        %1144 = vmatpush1.bf16.xpose.msra.mxu0 0
        %1145 = vmatprep.subr.bf16.mxu0 0
        %1146 = vmatpush1.bf16.xpose.msra.mxu0 0
        %1147 = vmatprep.subr.bf16.mxu0 0
        %1148 = vmatpush1.bf16.xpose.msra.mxu0 0
        %1149 = vmatprep.subr.bf16.mxu0 0
        %1150 = vmatpush1.bf16.xpose.msra.mxu0 0
        %1151 = vmatprep.mubr.bf16.mxu0 0
        %1152 = vmatmul.mubr.bf16.gmra.mrb[0].mxu0 %v1114
        %v1153 = vpop.f32.mrb[0].mxu0
        %v1154 = vadd.f32 0.0, %v1153
        %v1155 = vpop.f32.mrb[0].mxu0
        %v1156 = vpop.f32.mrb[0].mxu0
        %v1157 = vpop.f32.mrb[0].mxu0
        %1158 = vdwg.mxu0
        %v1159 = vsel %vm625, %v1154, -inf
        %1160 = vmax.xlane.f32.xlu0 %v1159
        %v1161 = vpop.xlane.xlu0 %1160
        %v1162 = vsub.f32 %v1154, %v1161
        %v1163 = vmul.f32 %v1162, 1.442695
        %v1164 = vpow.pop %v1163
        %v1165 = vsel %vm625, %v1164, 0.0
        %1166 = vadd.xlane.f32.xlu0 %v1165
        %v1167 = vpop.xlane.xlu0 %1166
        %v1168 = vrcp.pop %v1167
        %v1169 = vmul.f32 %v1164, %v1168
        %1171 = vrot.lane.b32.xlu0 %v1169, 24
        %v1172 = vpop.permute.xlu0 %1171
        %vm1174 = vcmask 261312
        %1175 = vst.msk [vmem:[%s431] sm:$0xff] %vm1174, %v1172
        %v1176 = vpack.c.bf16 %v1169, %v1169
        %1177 = vrot.lane.b32.xlu0 %v624, 104
        %v1178 = vpop.permute.xlu0 %1177
        %v1180 = vsel %vm625, %v1176, 0
        %v1183 = vsel %vm688, %v1178, 0
        %1185 = vmatprep.subr.bf16.mxu0 0
        %1186 = vmatpush1.bf16.msra.mxu0 %v1183
        %1187 = vmatprep.subr.bf16.mxu0 0
        %1188 = vmatpush1.bf16.msra.mxu0 0
        %1189 = vmatprep.subr.bf16.mxu0 0
        %1190 = vmatpush1.bf16.msra.mxu0 0
        %1191 = vmatprep.subr.bf16.mxu0 0
        %1192 = vmatpush1.bf16.msra.mxu0 0
        %1193 = vmatprep.subr.bf16.mxu0 0
        %1194 = vmatpush1.bf16.msra.mxu0 0
        %1195 = vmatprep.subr.bf16.mxu0 0
        %1196 = vmatpush1.bf16.msra.mxu0 0
        %1197 = vmatprep.subr.bf16.mxu0 0
        %1198 = vmatpush1.bf16.msra.mxu0 0
        %1199 = vmatprep.subr.bf16.mxu0 0
        %1200 = vmatpush1.bf16.msra.mxu0 0
        %1201 = vmatprep.subr.bf16.mxu0 0
        %1202 = vmatpush1.bf16.msra.mxu0 0
        %1203 = vmatprep.subr.bf16.mxu0 0
        %1204 = vmatpush1.bf16.msra.mxu0 0
        %1205 = vmatprep.subr.bf16.mxu0 0
        %1206 = vmatpush1.bf16.msra.mxu0 0
        %1207 = vmatprep.subr.bf16.mxu0 0
        %1208 = vmatpush1.bf16.msra.mxu0 0
        %1209 = vmatprep.subr.bf16.mxu0 0
        %1210 = vmatpush1.bf16.msra.mxu0 0
        %1211 = vmatprep.subr.bf16.mxu0 0
        %1212 = vmatpush1.bf16.msra.mxu0 0
        %1213 = vmatprep.subr.bf16.mxu0 0
        %1214 = vmatpush1.bf16.msra.mxu0 0
        %1215 = vmatprep.subr.bf16.mxu0 0
        %1216 = vmatpush1.bf16.msra.mxu0 0
        %1217 = vmatprep.mubr.bf16.mxu0 0
        %1218 = vmatmul.mubr.bf16.gmra.mrb[0].mxu0 %v1180
        %v1219 = vpop.f32.mrb[0].mxu0
        %v1220 = vadd.f32 0.0, %v1219
        %v1221 = vpop.f32.mrb[0].mxu0
        %v1222 = vpop.f32.mrb[0].mxu0
        %v1223 = vpop.f32.mrb[0].mxu0
        %1224 = vdwg.mxu0
        %v1225 = vpack.c.bf16 %v1220, %v1220
        %v1227 = vsel %vm625, %v1225, 0
        %v1230 = vsel %vm688, %v621, 0
        %1232 = vmatprep.subr.bf16.mxu0 0
        %1233 = vmatpush1.bf16.msra.mxu0 %v1230
        %1234 = vmatprep.subr.bf16.mxu0 0
        %1235 = vmatpush1.bf16.msra.mxu0 0
        %1236 = vmatprep.subr.bf16.mxu0 0
        %1237 = vmatpush1.bf16.msra.mxu0 0
        %1238 = vmatprep.subr.bf16.mxu0 0
        %1239 = vmatpush1.bf16.msra.mxu0 0
        %1240 = vmatprep.subr.bf16.mxu0 0
        %1241 = vmatpush1.bf16.msra.mxu0 0
        %1242 = vmatprep.subr.bf16.mxu0 0
        %1243 = vmatpush1.bf16.msra.mxu0 0
        %1244 = vmatprep.subr.bf16.mxu0 0
        %1245 = vmatpush1.bf16.msra.mxu0 0
        %1246 = vmatprep.subr.bf16.mxu0 0
        %1247 = vmatpush1.bf16.msra.mxu0 0
        %1248 = vmatprep.subr.bf16.mxu0 0
        %1249 = vmatpush1.bf16.msra.mxu0 0
        %1250 = vmatprep.subr.bf16.mxu0 0
        %1251 = vmatpush1.bf16.msra.mxu0 0
        %1252 = vmatprep.subr.bf16.mxu0 0
        %1253 = vmatpush1.bf16.msra.mxu0 0
        %1254 = vmatprep.subr.bf16.mxu0 0
        %1255 = vmatpush1.bf16.msra.mxu0 0
        %1256 = vmatprep.subr.bf16.mxu0 0
        %1257 = vmatpush1.bf16.msra.mxu0 0
        %1258 = vmatprep.subr.bf16.mxu0 0
        %1259 = vmatpush1.bf16.msra.mxu0 0
        %1260 = vmatprep.subr.bf16.mxu0 0
        %1261 = vmatpush1.bf16.msra.mxu0 0
        %1262 = vmatprep.subr.bf16.mxu0 0
        %1263 = vmatpush1.bf16.msra.mxu0 0
        %1264 = vmatprep.mubr.bf16.mxu0 0
        %1265 = vmatmul.mubr.bf16.gmra.mrb[0].mxu0 %v1227
        %v1266 = vpop.f32.mrb[0].mxu0
        %v1267 = vadd.f32 0.0, %v1266
        %v1268 = vpop.f32.mrb[0].mxu0
        %v1269 = vpop.f32.mrb[0].mxu0
        %v1270 = vpop.f32.mrb[0].mxu0
        %1271 = vdwg.mxu0
        %v1272 = vadd.f32 %v1108, %v1267
        %v1273 = vld [vmem:[%s6] sm:$0x1]
        %v1275 = vlaneseq
        %v1276 = vshrl.u32 %v1275, 7
        %v1277 = vsub.s32 0, %v1276
        %v1278 = vrot.slane %v1273, %v1277
        %v1280 = vadd.f32 %v1272, %v1278
        %vm1281 = vcmask 261120
        %1282 = vst.msk [vmem:[%s424] sm:$0xff] %vm1281, %v1280
        %s1283 = sand.u32 %s203, 1
        %s1284 = scalar_lea.sflag [#allocation4], %s1283
        %s1285 = sand.u32 %s203, 1
        %s1286 = smul.addr %s1285, 8
        %s1287 = scalar_lea.vmem [#allocation11], %s1286
        %s1288 = sand.u32 %s229, 1
        %s1289 = scalar_lea.sflag [#allocation13], %s1288
        %s1290 = sand.u32 %s229, 1
        %s1291 = smul.addr %s1290, 8
        %s1292 = scalar_lea.vmem [#allocation12], %s1291
        // Predicated region
        $region69: #{tpu_custom_call.1} parent=47 // pred_check
          %p1293 = pneg %p213
        $region70: #{tpu_custom_call.1} parent=47 // pred_check_branch
          %1295 = sbr.rel (%p1293) target = $region72
        $region71: #{tpu_custom_call.1} parent=47 // pred_region
          %s1297 = ssub.s32 128, 128
          %1298 = vsyncadd %s1284, %s1297
          %s1299 = smul.addr %s33, 128
          %s1300 = scalar_lea.hbm %s7, %s1299
          %s1302 = sshll.u32 %s1287, 4
          %s1303 = int_to_ptr.vmem [resolvable:$true] %s1302
          %1305 = dma.vmem_to_hbm [thread:$0]  %s1303, 128, %s1300, %s1284
        $region72: #{tpu_custom_call.1} parent=47 // pred_fallthru
          _
        // Predicated region
        $region73: #{tpu_custom_call.1} parent=47 // pred_check
          %p1306 = pneg %p239
        $region74: #{tpu_custom_call.1} parent=47 // pred_check_branch
          %1308 = sbr.rel (%p1306) target = $region76
        $region75: #{tpu_custom_call.1} parent=47 // pred_region
          %s1310 = ssub.s32 128, 128
          %1311 = vsyncadd %s1289, %s1310
          %s1312 = smul.addr %s33, 128
          %s1313 = scalar_lea.hbm %s8, %s1312
          %s1315 = sshll.u32 %s1292, 4
          %s1316 = int_to_ptr.vmem [resolvable:$true] %s1315
          %1318 = dma.vmem_to_hbm [thread:$0]  %s1316, 128, %s1313, %s1289
        $region76: #{tpu_custom_call.1} parent=47 // pred_fallthru
          _
      $region48: #{tpu_custom_call.1} parent=5 // pred_fallthru
        _
      %p1319 = scmp.le.s32.totalorder 2, %s28
      // Predicated region
      $region77: #{tpu_custom_call.1} parent=5 // pred_check
        %p1320 = pneg %p1319
      $region78: #{tpu_custom_call.1} parent=5 // pred_check_branch
        %1322 = sbr.rel (%p1320) target = $region80
      $region79: #{tpu_custom_call.1} parent=5 // pred_region
        %s1323 = ssub.s32 %s28, 2
        // Predicated region
        $region81: #{tpu_custom_call.1} parent=79 // pred_check
          %p1324 = pneg %p219
        $region82: #{tpu_custom_call.1} parent=79 // pred_check_branch
          %1326 = sbr.rel (%p1324) target = $region84
        $region83: #{tpu_custom_call.1} parent=79 // pred_region
          %s1327 = sand.u32 %s204, 1
          %s1328 = scalar_lea.sflag [#allocation4], %s1327
          %s1329 = sand.u32 %s204, 1
          %s1330 = smul.addr %s1329, 8
          %s1331 = scalar_lea.vmem [#allocation11], %s1330
          %1332 = dma.done %s1328, 128
        $region84: #{tpu_custom_call.1} parent=79 // pred_fallthru
          _
        // Predicated region
        $region85: #{tpu_custom_call.1} parent=79 // pred_check
          %p1333 = pneg %p245
        $region86: #{tpu_custom_call.1} parent=79 // pred_check_branch
          %1335 = sbr.rel (%p1333) target = $region88
        $region87: #{tpu_custom_call.1} parent=79 // pred_region
          %s1336 = sand.u32 %s230, 1
          %s1337 = scalar_lea.sflag [#allocation13], %s1336
          %s1338 = sand.u32 %s230, 1
          %s1339 = smul.addr %s1338, 8
          %s1340 = scalar_lea.vmem [#allocation12], %s1339
          %1341 = dma.done %s1337, 128
        $region88: #{tpu_custom_call.1} parent=79 // pred_fallthru
          _
      $region80: #{tpu_custom_call.1} parent=5 // pred_fallthru
        _
    $region6: #{tpu_custom_call.1} parent=1 // loop_footer
      %s32 = sadd.s32 1, %s28
    $region7: #{tpu_custom_call.1} parent=1 // loop_footer_branch
      %27 = sbr.rel target = $region3
    $region8: #{tpu_custom_call.1} parent=1 // loop_exit
      _
    %1342 = vsyncpa [#allocation3], 1
    %s1343 = scalar_lea.sflag [#allocation3], 1
    %1344 = vsyncpa %s1343, 1
    %1345 = vsyncpa [#allocation6], 1
    %s1346 = scalar_lea.sflag [#allocation6], 1
    %1347 = vsyncpa %s1346, 1
    %1348 = vsyncpa [#allocation9], 1
    %1349 = vsyncpa [#allocation4], 1
    %s1350 = scalar_lea.sflag [#allocation4], 1
    %1351 = vsyncpa %s1350, 1
    %1352 = vsyncpa [#allocation13], 1
    %s1353 = scalar_lea.sflag [#allocation13], 1
    %1354 = vsyncpa %s1353, 1

</llo_original>
